<compile_context>
chip_gen: v5e
topology: v5e:2x2
jax: 0.10.0
libtpu: 0.0.40
codegen_flags: <defaults>
</compile_context>

<pallas_src>
import jax
import jax.numpy as jnp
from jax.experimental import pallas as pl
from jax.experimental.pallas import tpu as pltpu

D_IN = 28 * 28          # 784
D_IN_PAD = 896          # 7 * 128, zero-padded contraction dim for fc1
H_PAD = 128             # all hidden dims padded to one MXU lane tile
N_CLASSES = 10
N_OUT_PAD = 128         # lane-dense output width


def mlp_kernel(x_ref,
               w1_ref, b1_ref,
               w2_ref, b2_ref,
               w3_ref, b3_ref,
               w4_ref, b4_ref,
               o_ref):
    # fc1 + relu   (bf16 MXU inputs, f32 accumulation)
    h = jnp.dot(x_ref[...], w1_ref[...], preferred_element_type=jnp.float32)
    h = jnp.maximum(h + b1_ref[...], 0.0)
    # fc2 + relu
    h = jnp.dot(h.astype(jnp.bfloat16), w2_ref[...],
                preferred_element_type=jnp.float32)
    h = jnp.maximum(h + b2_ref[...], 0.0)
    # fc3 + relu
    h = jnp.dot(h.astype(jnp.bfloat16), w3_ref[...],
                preferred_element_type=jnp.float32)
    h = jnp.maximum(h + b3_ref[...], 0.0)
    # fc4
    logits = jnp.dot(h.astype(jnp.bfloat16), w4_ref[...],
                     preferred_element_type=jnp.float32)
    logits = logits + b4_ref[...]

    # log_softmax over the first N_CLASSES lanes (rest is zero padding).
    col = jax.lax.broadcasted_iota(jnp.int32, logits.shape, 1)
    valid = col < N_CLASSES
    masked = jnp.where(valid, logits, -1e30)
    m = jnp.max(masked, axis=-1, keepdims=True)
    shifted = logits - m
    p = jnp.where(valid, jnp.exp(shifted), 0.0)
    lse = jnp.log(jnp.sum(p, axis=-1, keepdims=True))
    # Lane-dense (batch_tile, 128) store; columns >= 10 are garbage and are
    # sliced off in the wrapper.
    o_ref[...] = (shifted - lse).astype(o_ref.dtype)


def _pad2(a, rows, cols):
    return jnp.pad(a, ((0, rows - a.shape[0]), (0, cols - a.shape[1])))


def mlp_forward(x, params, *, batch_tile=256):
    """x: (B, 784) float32. params: dict of (in,out) weights, (1,out) biases."""
    B, d_in = x.shape
    assert d_in == D_IN

    n_tiles = pl.cdiv(B, batch_tile)
    B_pad = n_tiles * batch_tile

    # Pad + cast operands (zero padding is exact for Linear+ReLU chains).
    x_p = _pad2(x, B_pad, D_IN_PAD).astype(jnp.bfloat16)
    w1 = _pad2(params["w1"], D_IN_PAD, H_PAD).astype(jnp.bfloat16)
    w2 = _pad2(params["w2"], H_PAD, H_PAD).astype(jnp.bfloat16)
    w3 = _pad2(params["w3"], H_PAD, H_PAD).astype(jnp.bfloat16)
    w4 = _pad2(params["w4"], H_PAD, N_OUT_PAD).astype(jnp.bfloat16)
    b1 = _pad2(params["b1"], 1, H_PAD).astype(jnp.float32)
    b2 = _pad2(params["b2"], 1, H_PAD).astype(jnp.float32)
    b3 = _pad2(params["b3"], 1, H_PAD).astype(jnp.float32)
    b4 = _pad2(params["b4"], 1, N_OUT_PAD).astype(jnp.float32)

    def full_spec(arr):
        nd = arr.ndim
        # whole-array block, constant index_map -> DMA'd once, VMEM-resident
        return pl.BlockSpec(arr.shape, lambda *_: (0,) * nd)

    flops = 2 * B_pad * (D_IN_PAD * H_PAD + H_PAD * H_PAD
                         + H_PAD * H_PAD + H_PAD * N_OUT_PAD)
    bytes_accessed = (x_p.size * 2
                      + (w1.size + w2.size + w3.size + w4.size) * 2
                      + (b1.size + b2.size + b3.size + b4.size) * 4
                      + B_pad * N_OUT_PAD * 4)
    cost = pl.CostEstimate(flops=flops,
                           transcendentals=B_pad * N_OUT_PAD,
                           bytes_accessed=bytes_accessed)

    out = pl.pallas_call(
        mlp_kernel,
        out_shape=jax.ShapeDtypeStruct((B_pad, N_OUT_PAD), jnp.float32),
        grid_spec=pltpu.PrefetchScalarGridSpec(
            num_scalar_prefetch=0,
            grid=(n_tiles,),
            in_specs=[
                pl.BlockSpec((batch_tile, D_IN_PAD), lambda i: (i, 0)),
                full_spec(w1), full_spec(b1),
                full_spec(w2), full_spec(b2),
                full_spec(w3), full_spec(b3),
                full_spec(w4), full_spec(b4),
            ],
            out_specs=pl.BlockSpec((batch_tile, N_OUT_PAD), lambda i: (i, 0)),
        ),
        compiler_params=pltpu.CompilerParams(
            dimension_semantics=("parallel",),
            # VMEM use is < 3 MiB even at batch_tile=512; only bump
            # vmem_limit_bytes here if batch_tile is pushed past ~1024 on v5e.
        ),
        cost_estimate=cost,
    )(x_p, w1, b1, w2, b2, w3, b3, w4, b4)

    return out[:B, :N_CLASSES]


def init_params(key):
    """Deterministic synthetic parameters matching nn.Linear init/shapes."""
    sizes = [(D_IN, 128), (128, 64), (64, 32), (32, N_CLASSES)]
    params = {}
    keys = jax.random.split(key, len(sizes) * 2)
    for n, (fan_in, fan_out) in enumerate(sizes):
        kw, kb = keys[2 * n], keys[2 * n + 1]
        bound = 1.0 / jnp.sqrt(fan_in)
        # stored as (in, out): transpose of the PyTorch (out, in) weight
        params[f"w{n + 1}"] = jax.random.uniform(
            kw, (fan_in, fan_out), jnp.float32, -bound, bound)
        params[f"b{n + 1}"] = jax.random.uniform(
            kb, (1, fan_out), jnp.float32, -bound, bound)
    return params


def reference_forward_f32(x, params):
    h = jnp.maximum(x @ params["w1"] + params["b1"], 0.0)
    h = jnp.maximum(h @ params["w2"] + params["b2"], 0.0)
    h = jnp.maximum(h @ params["w3"] + params["b3"], 0.0)
    logits = h @ params["w4"] + params["b4"]
    return jax.nn.log_softmax(logits, axis=1)


def reference_forward_bf16(x, params):
    """Mirrors the kernel's bf16-inputs / f32-accumulation numerics."""
    def mm(a, w):
        return jnp.dot(a.astype(jnp.bfloat16), w.astype(jnp.bfloat16),
                       preferred_element_type=jnp.float32)
    h = jnp.maximum(mm(x, params["w1"]) + params["b1"], 0.0)
    h = jnp.maximum(mm(h, params["w2"]) + params["b2"], 0.0)
    h = jnp.maximum(mm(h, params["w3"]) + params["b3"], 0.0)
    logits = mm(h, params["w4"]) + params["b4"]
    return jax.nn.log_softmax(logits, axis=1)


if __name__ == "__main__":
    key = jax.random.PRNGKey(0)
    kx, kp = jax.random.split(key)
    params = init_params(kp)

    # Small demo batch (padded internally to one 256-row tile).
    B = 8
    x = jax.random.normal(kx, (B, D_IN), jnp.float32)
    out = jax.block_until_ready(mlp_forward(x, params))
    assert out.shape == (B, N_CLASSES)
    ref_bf16 = reference_forward_bf16(x, params)
    ref_f32 = reference_forward_f32(x, params)
    assert jnp.allclose(out, ref_bf16, atol=1e-3, rtol=1e-3), \
        float(jnp.max(jnp.abs(out - ref_bf16)))
    assert jnp.allclose(out, ref_f32, atol=1e-1, rtol=1e-1), \
        float(jnp.max(jnp.abs(out - ref_f32)))

    # Exercise a multi-step grid + batch padding (B not a tile multiple).
    B2 = 300
    x2 = jax.random.normal(jax.random.PRNGKey(1), (B2, D_IN), jnp.float32)
    out2 = jax.block_until_ready(mlp_forward(x2, params, batch_tile=128))
    assert out2.shape == (B2, N_CLASSES)
    ref2 = reference_forward_bf16(x2, params)
    assert jnp.allclose(out2, ref2, atol=1e-3, rtol=1e-3), \
        float(jnp.max(jnp.abs(out2 - ref2)))

    print("KERNEL_OK")
</pallas_src>

<mosaic_0001>
module attributes {stable_mosaic.version = 11 : i64} {
  func.func @mlp_kernel(%arg0: i32, %arg1: memref<256x896xbf16, #tpu.memory_space<vmem>>, %arg2: memref<896x128xbf16, #tpu.memory_space<vmem>>, %arg3: memref<1x128xf32, #tpu.memory_space<vmem>>, %arg4: memref<128x128xbf16, #tpu.memory_space<vmem>>, %arg5: memref<1x128xf32, #tpu.memory_space<vmem>>, %arg6: memref<128x128xbf16, #tpu.memory_space<vmem>>, %arg7: memref<1x128xf32, #tpu.memory_space<vmem>>, %arg8: memref<128x128xbf16, #tpu.memory_space<vmem>>, %arg9: memref<1x128xf32, #tpu.memory_space<vmem>>, %arg10: memref<256x128xf32, #tpu.memory_space<vmem>>) attributes {dimension_semantics = [#tpu.dimension_semantics<parallel>], iteration_bounds = array<i64: 1>, scalar_prefetch = 0 : i64, scratch_operands = 0 : i64, tpu.core_type = #tpu.core_type<tc>, window_params = [{transform_indices = @transform_0, window_bounds = array<i64: 256, 896>}, {pipeline_mode = #tpu.pipeline_mode<synchronous>, transform_indices = @transform_1, window_bounds = array<i64: 896, 128>}, {pipeline_mode = #tpu.pipeline_mode<synchronous>, transform_indices = @transform_2, window_bounds = array<i64: 1, 128>}, {pipeline_mode = #tpu.pipeline_mode<synchronous>, transform_indices = @transform_3, window_bounds = array<i64: 128, 128>}, {pipeline_mode = #tpu.pipeline_mode<synchronous>, transform_indices = @transform_4, window_bounds = array<i64: 1, 128>}, {pipeline_mode = #tpu.pipeline_mode<synchronous>, transform_indices = @transform_5, window_bounds = array<i64: 128, 128>}, {pipeline_mode = #tpu.pipeline_mode<synchronous>, transform_indices = @transform_6, window_bounds = array<i64: 1, 128>}, {pipeline_mode = #tpu.pipeline_mode<synchronous>, transform_indices = @transform_7, window_bounds = array<i64: 128, 128>}, {pipeline_mode = #tpu.pipeline_mode<synchronous>, transform_indices = @transform_8, window_bounds = array<i64: 1, 128>}, {transform_indices = @transform_9, window_bounds = array<i64: 256, 128>}]} {
    %c0 = arith.constant 0 : index
    %c0_0 = arith.constant 0 : index
    %0 = vector.load %arg1[%c0, %c0_0] : memref<256x896xbf16, #tpu.memory_space<vmem>>, vector<256x896xbf16>
    %c0_1 = arith.constant 0 : index
    %c0_2 = arith.constant 0 : index
    %1 = vector.load %arg2[%c0_1, %c0_2] : memref<896x128xbf16, #tpu.memory_space<vmem>>, vector<896x128xbf16>
    %cst = arith.constant dense<0.000000e+00> : vector<256x128xf32>
    %2 = tpu.matmul %0, %1, %cst {dimension_numbers = #tpu.dot_dimension_numbers<[1], [0], [0], [1], [0, 0, 1, 1], [], []>} : vector<256x896xbf16>, vector<896x128xbf16>, vector<256x128xf32> -> vector<256x128xf32>
    %c0_3 = arith.constant 0 : index
    %c0_4 = arith.constant 0 : index
    %3 = vector.load %arg3[%c0_3, %c0_4] : memref<1x128xf32, #tpu.memory_space<vmem>>, vector<1x128xf32>
    %4 = vector.broadcast %3 : vector<1x128xf32> to vector<256x128xf32>
    %5 = arith.addf %2, %4 : vector<256x128xf32>
    %cst_5 = arith.constant 0.000000e+00 : f32
    %6 = vector.broadcast %cst_5 : f32 to vector<256x128xf32>
    %7 = arith.maximumf %5, %6 : vector<256x128xf32>
    %8 = arith.truncf %7 : vector<256x128xf32> to vector<256x128xbf16>
    %c0_6 = arith.constant 0 : index
    %c0_7 = arith.constant 0 : index
    %9 = vector.load %arg4[%c0_6, %c0_7] : memref<128x128xbf16, #tpu.memory_space<vmem>>, vector<128x128xbf16>
    %cst_8 = arith.constant dense<0.000000e+00> : vector<256x128xf32>
    %10 = tpu.matmul %8, %9, %cst_8 {dimension_numbers = #tpu.dot_dimension_numbers<[1], [0], [0], [1], [0, 0, 1, 1], [], []>} : vector<256x128xbf16>, vector<128x128xbf16>, vector<256x128xf32> -> vector<256x128xf32>
    %c0_9 = arith.constant 0 : index
    %c0_10 = arith.constant 0 : index
    %11 = vector.load %arg5[%c0_9, %c0_10] : memref<1x128xf32, #tpu.memory_space<vmem>>, vector<1x128xf32>
    %12 = vector.broadcast %11 : vector<1x128xf32> to vector<256x128xf32>
    %13 = arith.addf %10, %12 : vector<256x128xf32>
    %cst_11 = arith.constant 0.000000e+00 : f32
    %14 = vector.broadcast %cst_11 : f32 to vector<256x128xf32>
    %15 = arith.maximumf %13, %14 : vector<256x128xf32>
    %16 = arith.truncf %15 : vector<256x128xf32> to vector<256x128xbf16>
    %c0_12 = arith.constant 0 : index
    %c0_13 = arith.constant 0 : index
    %17 = vector.load %arg6[%c0_12, %c0_13] : memref<128x128xbf16, #tpu.memory_space<vmem>>, vector<128x128xbf16>
    %cst_14 = arith.constant dense<0.000000e+00> : vector<256x128xf32>
    %18 = tpu.matmul %16, %17, %cst_14 {dimension_numbers = #tpu.dot_dimension_numbers<[1], [0], [0], [1], [0, 0, 1, 1], [], []>} : vector<256x128xbf16>, vector<128x128xbf16>, vector<256x128xf32> -> vector<256x128xf32>
    %c0_15 = arith.constant 0 : index
    %c0_16 = arith.constant 0 : index
    %19 = vector.load %arg7[%c0_15, %c0_16] : memref<1x128xf32, #tpu.memory_space<vmem>>, vector<1x128xf32>
    %20 = vector.broadcast %19 : vector<1x128xf32> to vector<256x128xf32>
    %21 = arith.addf %18, %20 : vector<256x128xf32>
    %cst_17 = arith.constant 0.000000e+00 : f32
    %22 = vector.broadcast %cst_17 : f32 to vector<256x128xf32>
    %23 = arith.maximumf %21, %22 : vector<256x128xf32>
    %24 = arith.truncf %23 : vector<256x128xf32> to vector<256x128xbf16>
    %c0_18 = arith.constant 0 : index
    %c0_19 = arith.constant 0 : index
    %25 = vector.load %arg8[%c0_18, %c0_19] : memref<128x128xbf16, #tpu.memory_space<vmem>>, vector<128x128xbf16>
    %cst_20 = arith.constant dense<0.000000e+00> : vector<256x128xf32>
    %26 = tpu.matmul %24, %25, %cst_20 {dimension_numbers = #tpu.dot_dimension_numbers<[1], [0], [0], [1], [0, 0, 1, 1], [], []>} : vector<256x128xbf16>, vector<128x128xbf16>, vector<256x128xf32> -> vector<256x128xf32>
    %c0_21 = arith.constant 0 : index
    %c0_22 = arith.constant 0 : index
    %27 = vector.load %arg9[%c0_21, %c0_22] : memref<1x128xf32, #tpu.memory_space<vmem>>, vector<1x128xf32>
    %28 = vector.broadcast %27 : vector<1x128xf32> to vector<256x128xf32>
    %29 = arith.addf %26, %28 : vector<256x128xf32>
    %30 = tpu.iota {dimensions = array<i32: 1>} : vector<256x128xi32>
    %c10_i32 = arith.constant 10 : i32
    %31 = vector.broadcast %c10_i32 : i32 to vector<256x128xi32>
    %32 = arith.cmpi slt, %30, %31 : vector<256x128xi32>
    %cst_23 = arith.constant -1.000000e+30 : f32
    %33 = vector.broadcast %cst_23 : f32 to vector<256x128xf32>
    %34 = arith.select %32, %29, %33 : vector<256x128xi1>, vector<256x128xf32>
    %cst_24 = arith.constant dense<0xFF800000> : vector<256xf32>
    %35 = vector.multi_reduction <maximumf>, %34, %cst_24 [1] : vector<256x128xf32> to vector<256xf32>
    %36 = vector.shape_cast %35 : vector<256xf32> to vector<256x1xf32>
    %37 = vector.broadcast %36 : vector<256x1xf32> to vector<256x128xf32>
    %38 = arith.subf %29, %37 : vector<256x128xf32>
    %39 = math.exp %38 : vector<256x128xf32>
    %cst_25 = arith.constant 0.000000e+00 : f32
    %40 = vector.broadcast %cst_25 : f32 to vector<256x128xf32>
    %41 = arith.select %32, %39, %40 : vector<256x128xi1>, vector<256x128xf32>
    %cst_26 = arith.constant dense<0.000000e+00> : vector<256xf32>
    %42 = vector.multi_reduction <add>, %41, %cst_26 [1] : vector<256x128xf32> to vector<256xf32>
    %43 = vector.shape_cast %42 : vector<256xf32> to vector<256x1xf32>
    %44 = math.log %43 : vector<256x1xf32>
    %45 = vector.broadcast %44 : vector<256x1xf32> to vector<256x128xf32>
    %46 = arith.subf %38, %45 : vector<256x128xf32>
    %c0_27 = arith.constant 0 : index
    %c0_28 = arith.constant 0 : index
    %47 = vector.load %arg10[%c0_27, %c0_28] : memref<256x128xf32, #tpu.memory_space<vmem>>, vector<256x128xf32>
    tpu.vector_store %arg10[%c0_27, %c0_28], %46 {strides = array<i32>} : memref<256x128xf32, #tpu.memory_space<vmem>>, vector<256x128xf32>,
    return
  }
  func.func @transform_0(%arg0: i32) -> (i32, i32) {
    %c0_i32 = arith.constant 0 : i32
    %c0_i32_0 = arith.constant 0 : i32
    return %arg0, %c0_i32 : i32, i32
  }
  func.func @transform_1(%arg0: i32) -> (i32, i32) {
    %c0_i32 = arith.constant 0 : i32
    %c0_i32_0 = arith.constant 0 : i32
    %c0_i32_1 = arith.constant 0 : i32
    return %c0_i32, %c0_i32_0 : i32, i32
  }
  func.func @transform_2(%arg0: i32) -> (i32, i32) {
    %c0_i32 = arith.constant 0 : i32
    %c0_i32_0 = arith.constant 0 : i32
    %c0_i32_1 = arith.constant 0 : i32
    return %c0_i32, %c0_i32_0 : i32, i32
  }
  func.func @transform_3(%arg0: i32) -> (i32, i32) {
    %c0_i32 = arith.constant 0 : i32
    %c0_i32_0 = arith.constant 0 : i32
    %c0_i32_1 = arith.constant 0 : i32
    return %c0_i32, %c0_i32_0 : i32, i32
  }
  func.func @transform_4(%arg0: i32) -> (i32, i32) {
    %c0_i32 = arith.constant 0 : i32
    %c0_i32_0 = arith.constant 0 : i32
    %c0_i32_1 = arith.constant 0 : i32
    return %c0_i32, %c0_i32_0 : i32, i32
  }
  func.func @transform_5(%arg0: i32) -> (i32, i32) {
    %c0_i32 = arith.constant 0 : i32
    %c0_i32_0 = arith.constant 0 : i32
    %c0_i32_1 = arith.constant 0 : i32
    return %c0_i32, %c0_i32_0 : i32, i32
  }
  func.func @transform_6(%arg0: i32) -> (i32, i32) {
    %c0_i32 = arith.constant 0 : i32
    %c0_i32_0 = arith.constant 0 : i32
    %c0_i32_1 = arith.constant 0 : i32
    return %c0_i32, %c0_i32_0 : i32, i32
  }
  func.func @transform_7(%arg0: i32) -> (i32, i32) {
    %c0_i32 = arith.constant 0 : i32
    %c0_i32_0 = arith.constant 0 : i32
    %c0_i32_1 = arith.constant 0 : i32
    return %c0_i32, %c0_i32_0 : i32, i32
  }
  func.func @transform_8(%arg0: i32) -> (i32, i32) {
    %c0_i32 = arith.constant 0 : i32
    %c0_i32_0 = arith.constant 0 : i32
    %c0_i32_1 = arith.constant 0 : i32
    return %c0_i32, %c0_i32_0 : i32, i32
  }
  func.func @transform_9(%arg0: i32) -> (i32, i32) {
    %c0_i32 = arith.constant 0 : i32
    %c0_i32_0 = arith.constant 0 : i32
    return %arg0, %c0_i32 : i32, i32
  }
}

</mosaic_0001>

<llo_original>
// kernel: tpu_custom_call.1
$region0: #{tpu_custom_call.1}
  #allocation0 [shape = 'u32[]', space=smem, size = 0x4, offset = 0x4, fixed_abs, tag = 'smem constant byte address 0x4 - core index']
  #allocation1 [shape = 'u32[72,128]{1,0:T(1,128)}', space=vmem, size = 0x9000, scoped, tag = 'internal scratch']
  %s0 = inlined_call_operand.hbm [shape: bf16[256,896], index: 0, kind: input, shape index: {}]
  %s1 = inlined_call_operand.hbm [shape: bf16[896,128], index: 1, kind: input, shape index: {}]
  %s2 = inlined_call_operand.vmem [shape: f32[1,128], index: 2, kind: input, shape index: {}]
  %s3 = inlined_call_operand.hbm [shape: bf16[128,128], index: 3, kind: input, shape index: {}]
  %s4 = inlined_call_operand.vmem [shape: f32[1,128], index: 4, kind: input, shape index: {}]
  %s5 = inlined_call_operand.hbm [shape: bf16[128,128], index: 5, kind: input, shape index: {}]
  %s6 = inlined_call_operand.vmem [shape: f32[1,128], index: 6, kind: input, shape index: {}]
  %s7 = inlined_call_operand.hbm [shape: bf16[128,128], index: 7, kind: input, shape index: {}]
  %s8 = inlined_call_operand.vmem [shape: f32[1,128], index: 8, kind: input, shape index: {}]
  %s9 = inlined_call_operand.hbm [shape: f32[256,128], index: 9, kind: output, shape index: {}]
  %s10 = sld [smem:[#allocation0]]
  $region66: #{tpu_custom_call.1} parent=0
    _
  %s12 = ssub.s32 1, %s10
  %s13 = scalar_select 0, %s12, %s10
  $region1: #{tpu_custom_call.1} parent=0
    #allocation2 [shape = 'u8[458752]{0}', space=vmem, size = 0x70000, scoped, tag = 'input window, operand 0, single buffered']
    #allocation3 [shape = 's32[1]{0}', space=sflag, size = 0x4, scoped, tag = 'scoped memory for tpu_custom_call.1']
    #allocation4 [shape = 's32[1]{0}', space=sflag, size = 0x4, scoped, tag = 'scoped memory for tpu_custom_call.1']
    #allocation5 [shape = 'u8[229376]{0}', space=vmem, size = 0x38000, scoped, tag = 'input window, operand 1, single buffered']
    #allocation6 [shape = 's32[1]{0}', space=sflag, size = 0x4, scoped, tag = 'scoped memory for tpu_custom_call.1']
    #allocation7 [shape = 'u8[32768]{0}', space=vmem, size = 0x8000, scoped, tag = 'input window, operand 3, single buffered']
    #allocation8 [shape = 'u8[32768]{0}', space=vmem, size = 0x8000, scoped, tag = 'input window, operand 5, single buffered']
    #allocation9 [shape = 's32[1]{0}', space=sflag, size = 0x4, scoped, tag = 'scoped memory for tpu_custom_call.1']
    #allocation10 [shape = 'u8[32768]{0}', space=vmem, size = 0x8000, scoped, tag = 'input window, operand 7, single buffered']
    #allocation11 [shape = 'u8[131072]{0}', space=vmem, size = 0x20000, scoped, tag = 'output window, operand 0, single buffered']
    %14 = vsyncpa [#allocation3], 0
    %15 = vsyncpa [#allocation6], 0
    %16 = vsyncpa [#allocation9], 0
    %17 = vsyncpa [#allocation4], 0
    // Predicated region
    $region2: #{tpu_custom_call.1} parent=1 // pred_check
      _
    $region3: #{tpu_custom_call.1} parent=1 // pred_check_branch
      %19 = sbr.rel (0) target = $region5
    $region4: #{tpu_custom_call.1} parent=1 // pred_region
      %21 = vsyncadd [#allocation3], 0
      %s22 = sshll.u32 %s0, 4
      %s23 = int_to_ptr.hbm [resolvable:$true] %s22
      %s24 = sshll.u32 [#allocation2], 4
      %s25 = int_to_ptr.vmem [resolvable:$true] %s24
      %30 = dma.hbm_to_vmem [thread:$0]  %s23, 14336, %s25, [#allocation3], 448, 448, 28
    $region5: #{tpu_custom_call.1} parent=1 // pred_fallthru
      _
    // Predicated region
    $region6: #{tpu_custom_call.1} parent=1 // pred_check
      _
    $region7: #{tpu_custom_call.1} parent=1 // pred_check_branch
      %32 = sbr.rel (0) target = $region9
    $region8: #{tpu_custom_call.1} parent=1 // pred_region
      %34 = vsyncadd [#allocation6], 0
      %s35 = sshll.u32 %s1, 4
      %s36 = int_to_ptr.hbm [resolvable:$true] %s35
      %s37 = sshll.u32 [#allocation5], 4
      %s38 = int_to_ptr.vmem [resolvable:$true] %s37
      %43 = dma.hbm_to_vmem [thread:$0]  %s36, 7168, %s38, [#allocation6], 64, 64, 4
    $region9: #{tpu_custom_call.1} parent=1 // pred_fallthru
      _
    // Predicated region
    $region10: #{tpu_custom_call.1} parent=1 // pred_check
      _
    $region11: #{tpu_custom_call.1} parent=1 // pred_check_branch
      %45 = sbr.rel (0) target = $region13
    $region12: #{tpu_custom_call.1} parent=1 // pred_region
      _
    $region13: #{tpu_custom_call.1} parent=1 // pred_fallthru
      _
    // Predicated region
    $region14: #{tpu_custom_call.1} parent=1 // pred_check
      _
    $region15: #{tpu_custom_call.1} parent=1 // pred_check_branch
      %47 = sbr.rel (0) target = $region17
    $region16: #{tpu_custom_call.1} parent=1 // pred_region
      %49 = vsyncadd [#allocation6], 0
      %s50 = sshll.u32 %s3, 4
      %s51 = int_to_ptr.hbm [resolvable:$true] %s50
      %s52 = sshll.u32 [#allocation7], 4
      %s53 = int_to_ptr.vmem [resolvable:$true] %s52
      %58 = dma.hbm_to_vmem [thread:$0]  %s51, 1024, %s53, [#allocation6], 64, 64, 4
    $region17: #{tpu_custom_call.1} parent=1 // pred_fallthru
      _
    // Predicated region
    $region18: #{tpu_custom_call.1} parent=1 // pred_check
      _
    $region19: #{tpu_custom_call.1} parent=1 // pred_check_branch
      %60 = sbr.rel (0) target = $region21
    $region20: #{tpu_custom_call.1} parent=1 // pred_region
      _
    $region21: #{tpu_custom_call.1} parent=1 // pred_fallthru
      _
    // Predicated region
    $region22: #{tpu_custom_call.1} parent=1 // pred_check
      _
    $region23: #{tpu_custom_call.1} parent=1 // pred_check_branch
      %62 = sbr.rel (0) target = $region25
    $region24: #{tpu_custom_call.1} parent=1 // pred_region
      %64 = vsyncadd [#allocation9], 0
      %s65 = sshll.u32 %s5, 4
      %s66 = int_to_ptr.hbm [resolvable:$true] %s65
      %s67 = sshll.u32 [#allocation8], 4
      %s68 = int_to_ptr.vmem [resolvable:$true] %s67
      %73 = dma.hbm_to_vmem [thread:$0]  %s66, 1024, %s68, [#allocation9], 64, 64, 4
    $region25: #{tpu_custom_call.1} parent=1 // pred_fallthru
      _
    // Predicated region
    $region26: #{tpu_custom_call.1} parent=1 // pred_check
      _
    $region27: #{tpu_custom_call.1} parent=1 // pred_check_branch
      %75 = sbr.rel (0) target = $region29
    $region28: #{tpu_custom_call.1} parent=1 // pred_region
      _
    $region29: #{tpu_custom_call.1} parent=1 // pred_fallthru
      _
    // Predicated region
    $region30: #{tpu_custom_call.1} parent=1 // pred_check
      _
    $region31: #{tpu_custom_call.1} parent=1 // pred_check_branch
      %77 = sbr.rel (0) target = $region33
    $region32: #{tpu_custom_call.1} parent=1 // pred_region
      %79 = vsyncadd [#allocation9], 0
      %s80 = sshll.u32 %s7, 4
      %s81 = int_to_ptr.hbm [resolvable:$true] %s80
      %s82 = sshll.u32 [#allocation10], 4
      %s83 = int_to_ptr.vmem [resolvable:$true] %s82
      %88 = dma.hbm_to_vmem [thread:$0]  %s81, 1024, %s83, [#allocation9], 64, 64, 4
    $region33: #{tpu_custom_call.1} parent=1 // pred_fallthru
      _
    // Predicated region
    $region34: #{tpu_custom_call.1} parent=1 // pred_check
      _
    $region35: #{tpu_custom_call.1} parent=1 // pred_check_branch
      %90 = sbr.rel (0) target = $region37
    $region36: #{tpu_custom_call.1} parent=1 // pred_region
      _
    $region37: #{tpu_custom_call.1} parent=1 // pred_fallthru
      _
    // Predicated region
    $region38: #{tpu_custom_call.1} parent=1 // pred_check
      _
    $region39: #{tpu_custom_call.1} parent=1 // pred_check_branch
      %92 = sbr.rel (0) target = $region41
    $region40: #{tpu_custom_call.1} parent=1 // pred_region
      %94 = dma.done [#allocation3], 14336
    $region41: #{tpu_custom_call.1} parent=1 // pred_fallthru
      _
    // Predicated region
    $region42: #{tpu_custom_call.1} parent=1 // pred_check
      _
    $region43: #{tpu_custom_call.1} parent=1 // pred_check_branch
      %96 = sbr.rel (0) target = $region45
    $region44: #{tpu_custom_call.1} parent=1 // pred_region
      %98 = dma.done [#allocation6], 7168
    $region45: #{tpu_custom_call.1} parent=1 // pred_fallthru
      _
    // Predicated region
    $region46: #{tpu_custom_call.1} parent=1 // pred_check
      _
    $region47: #{tpu_custom_call.1} parent=1 // pred_check_branch
      %100 = sbr.rel (0) target = $region49
    $region48: #{tpu_custom_call.1} parent=1 // pred_region
      %102 = dma.done [#allocation6], 1024
    $region49: #{tpu_custom_call.1} parent=1 // pred_fallthru
      _
    // Predicated region
    $region50: #{tpu_custom_call.1} parent=1 // pred_check
      _
    $region51: #{tpu_custom_call.1} parent=1 // pred_check_branch
      %104 = sbr.rel (0) target = $region53
    $region52: #{tpu_custom_call.1} parent=1 // pred_region
      %106 = dma.done [#allocation9], 1024
    $region53: #{tpu_custom_call.1} parent=1 // pred_fallthru
      _
    // Predicated region
    $region54: #{tpu_custom_call.1} parent=1 // pred_check
      _
    $region55: #{tpu_custom_call.1} parent=1 // pred_check_branch
      %108 = sbr.rel (0) target = $region57
    $region56: #{tpu_custom_call.1} parent=1 // pred_region
      %110 = dma.done [#allocation9], 1024
    $region57: #{tpu_custom_call.1} parent=1 // pred_fallthru
      _
    %v111 = vld [vmem:[#allocation2] sm:$0xff]
    %v112 = vld [vmem:[#allocation2 + $0x8] sm:$0xff]
    %v113 = vld [vmem:[#allocation2 + $0x10] sm:$0xff]
    %v114 = vld [vmem:[#allocation2 + $0x18] sm:$0xf]
    %v115 = vld [vmem:[#allocation2 + $0x1c] sm:$0xff]
    %v116 = vld [vmem:[#allocation2 + $0x24] sm:$0xff]
    %v117 = vld [vmem:[#allocation2 + $0x2c] sm:$0xff]
    %v118 = vld [vmem:[#allocation2 + $0x34] sm:$0xf]
    %v119 = vld [vmem:[#allocation2 + $0x38] sm:$0xff]
    %v120 = vld [vmem:[#allocation2 + $0x40] sm:$0xff]
    %v121 = vld [vmem:[#allocation2 + $0x48] sm:$0xff]
    %v122 = vld [vmem:[#allocation2 + $0x50] sm:$0xf]
    %v123 = vld [vmem:[#allocation2 + $0x54] sm:$0xff]
    %v124 = vld [vmem:[#allocation2 + $0x5c] sm:$0xff]
    %v125 = vld [vmem:[#allocation2 + $0x64] sm:$0xff]
    %v126 = vld [vmem:[#allocation2 + $0x6c] sm:$0xf]
    %v127 = vld [vmem:[#allocation2 + $0x70] sm:$0xff]
    %v128 = vld [vmem:[#allocation2 + $0x78] sm:$0xff]
    %v129 = vld [vmem:[#allocation2 + $0x80] sm:$0xff]
    %v130 = vld [vmem:[#allocation2 + $0x88] sm:$0xf]
    %v131 = vld [vmem:[#allocation2 + $0x8c] sm:$0xff]
    %v132 = vld [vmem:[#allocation2 + $0x94] sm:$0xff]
    %v133 = vld [vmem:[#allocation2 + $0x9c] sm:$0xff]
    %v134 = vld [vmem:[#allocation2 + $0xa4] sm:$0xf]
    %v135 = vld [vmem:[#allocation2 + $0xa8] sm:$0xff]
    %v136 = vld [vmem:[#allocation2 + $0xb0] sm:$0xff]
    %v137 = vld [vmem:[#allocation2 + $0xb8] sm:$0xff]
    %v138 = vld [vmem:[#allocation2 + $0xc0] sm:$0xf]
    %v139 = vld [vmem:[#allocation2 + $0xc4] sm:$0xff]
    %v140 = vld [vmem:[#allocation2 + $0xcc] sm:$0xff]
    %v141 = vld [vmem:[#allocation2 + $0xd4] sm:$0xff]
    %v142 = vld [vmem:[#allocation2 + $0xdc] sm:$0xf]
    %v143 = vld [vmem:[#allocation2 + $0xe0] sm:$0xff]
    %v144 = vld [vmem:[#allocation2 + $0xe8] sm:$0xff]
    %v145 = vld [vmem:[#allocation2 + $0xf0] sm:$0xff]
    %v146 = vld [vmem:[#allocation2 + $0xf8] sm:$0xf]
    %v147 = vld [vmem:[#allocation2 + $0xfc] sm:$0xff]
    %v148 = vld [vmem:[#allocation2 + $0x104] sm:$0xff]
    %v149 = vld [vmem:[#allocation2 + $0x10c] sm:$0xff]
    %v150 = vld [vmem:[#allocation2 + $0x114] sm:$0xf]
    %v151 = vld [vmem:[#allocation2 + $0x118] sm:$0xff]
    %v152 = vld [vmem:[#allocation2 + $0x120] sm:$0xff]
    %v153 = vld [vmem:[#allocation2 + $0x128] sm:$0xff]
    %v154 = vld [vmem:[#allocation2 + $0x130] sm:$0xf]
    %v155 = vld [vmem:[#allocation2 + $0x134] sm:$0xff]
    %v156 = vld [vmem:[#allocation2 + $0x13c] sm:$0xff]
    %v157 = vld [vmem:[#allocation2 + $0x144] sm:$0xff]
    %v158 = vld [vmem:[#allocation2 + $0x14c] sm:$0xf]
    %v159 = vld [vmem:[#allocation2 + $0x150] sm:$0xff]
    %v160 = vld [vmem:[#allocation2 + $0x158] sm:$0xff]
    %v161 = vld [vmem:[#allocation2 + $0x160] sm:$0xff]
    %v162 = vld [vmem:[#allocation2 + $0x168] sm:$0xf]
    %v163 = vld [vmem:[#allocation2 + $0x16c] sm:$0xff]
    %v164 = vld [vmem:[#allocation2 + $0x174] sm:$0xff]
    %v165 = vld [vmem:[#allocation2 + $0x17c] sm:$0xff]
    %v166 = vld [vmem:[#allocation2 + $0x184] sm:$0xf]
    %v167 = vld [vmem:[#allocation2 + $0x188] sm:$0xff]
    %v168 = vld [vmem:[#allocation2 + $0x190] sm:$0xff]
    %v169 = vld [vmem:[#allocation2 + $0x198] sm:$0xff]
    %v170 = vld [vmem:[#allocation2 + $0x1a0] sm:$0xf]
    %v171 = vld [vmem:[#allocation2 + $0x1a4] sm:$0xff]
    %v172 = vld [vmem:[#allocation2 + $0x1ac] sm:$0xff]
    %v173 = vld [vmem:[#allocation2 + $0x1b4] sm:$0xff]
    %v174 = vld [vmem:[#allocation2 + $0x1bc] sm:$0xf]
    %v175 = vld [vmem:[#allocation2 + $0x1c0] sm:$0xff]
    %v176 = vld [vmem:[#allocation2 + $0x1c8] sm:$0xff]
    %v177 = vld [vmem:[#allocation2 + $0x1d0] sm:$0xff]
    %v178 = vld [vmem:[#allocation2 + $0x1d8] sm:$0xf]
    %v179 = vld [vmem:[#allocation2 + $0x1dc] sm:$0xff]
    %v180 = vld [vmem:[#allocation2 + $0x1e4] sm:$0xff]
    %v181 = vld [vmem:[#allocation2 + $0x1ec] sm:$0xff]
    %v182 = vld [vmem:[#allocation2 + $0x1f4] sm:$0xf]
    %v183 = vld [vmem:[#allocation2 + $0x1f8] sm:$0xff]
    %v184 = vld [vmem:[#allocation2 + $0x200] sm:$0xff]
    %v185 = vld [vmem:[#allocation2 + $0x208] sm:$0xff]
    %v186 = vld [vmem:[#allocation2 + $0x210] sm:$0xf]
    %v187 = vld [vmem:[#allocation2 + $0x214] sm:$0xff]
    %v188 = vld [vmem:[#allocation2 + $0x21c] sm:$0xff]
    %v189 = vld [vmem:[#allocation2 + $0x224] sm:$0xff]
    %v190 = vld [vmem:[#allocation2 + $0x22c] sm:$0xf]
    %v191 = vld [vmem:[#allocation2 + $0x230] sm:$0xff]
    %v192 = vld [vmem:[#allocation2 + $0x238] sm:$0xff]
    %v193 = vld [vmem:[#allocation2 + $0x240] sm:$0xff]
    %v194 = vld [vmem:[#allocation2 + $0x248] sm:$0xf]
    %v195 = vld [vmem:[#allocation2 + $0x24c] sm:$0xff]
    %v196 = vld [vmem:[#allocation2 + $0x254] sm:$0xff]
    %v197 = vld [vmem:[#allocation2 + $0x25c] sm:$0xff]
    %v198 = vld [vmem:[#allocation2 + $0x264] sm:$0xf]
    %v199 = vld [vmem:[#allocation2 + $0x268] sm:$0xff]
    %v200 = vld [vmem:[#allocation2 + $0x270] sm:$0xff]
    %v201 = vld [vmem:[#allocation2 + $0x278] sm:$0xff]
    %v202 = vld [vmem:[#allocation2 + $0x280] sm:$0xf]
    %v203 = vld [vmem:[#allocation2 + $0x284] sm:$0xff]
    %v204 = vld [vmem:[#allocation2 + $0x28c] sm:$0xff]
    %v205 = vld [vmem:[#allocation2 + $0x294] sm:$0xff]
    %v206 = vld [vmem:[#allocation2 + $0x29c] sm:$0xf]
    %v207 = vld [vmem:[#allocation2 + $0x2a0] sm:$0xff]
    %v208 = vld [vmem:[#allocation2 + $0x2a8] sm:$0xff]
    %v209 = vld [vmem:[#allocation2 + $0x2b0] sm:$0xff]
    %v210 = vld [vmem:[#allocation2 + $0x2b8] sm:$0xf]
    %v211 = vld [vmem:[#allocation2 + $0x2bc] sm:$0xff]
    %v212 = vld [vmem:[#allocation2 + $0x2c4] sm:$0xff]
    %v213 = vld [vmem:[#allocation2 + $0x2cc] sm:$0xff]
    %v214 = vld [vmem:[#allocation2 + $0x2d4] sm:$0xf]
    %v215 = vld [vmem:[#allocation2 + $0x2d8] sm:$0xff]
    %v216 = vld [vmem:[#allocation2 + $0x2e0] sm:$0xff]
    %v217 = vld [vmem:[#allocation2 + $0x2e8] sm:$0xff]
    %v218 = vld [vmem:[#allocation2 + $0x2f0] sm:$0xf]
    %v219 = vld [vmem:[#allocation2 + $0x2f4] sm:$0xff]
    %v220 = vld [vmem:[#allocation2 + $0x2fc] sm:$0xff]
    %v221 = vld [vmem:[#allocation2 + $0x304] sm:$0xff]
    %v222 = vld [vmem:[#allocation2 + $0x30c] sm:$0xf]
    %v223 = vld [vmem:[#allocation2 + $0x310] sm:$0xff]
    %v224 = vld [vmem:[#allocation2 + $0x318] sm:$0xff]
    %v225 = vld [vmem:[#allocation2 + $0x320] sm:$0xff]
    %v226 = vld [vmem:[#allocation2 + $0x328] sm:$0xf]
    %v227 = vld [vmem:[#allocation2 + $0x32c] sm:$0xff]
    %v228 = vld [vmem:[#allocation2 + $0x334] sm:$0xff]
    %v229 = vld [vmem:[#allocation2 + $0x33c] sm:$0xff]
    %v230 = vld [vmem:[#allocation2 + $0x344] sm:$0xf]
    %v231 = vld [vmem:[#allocation2 + $0x348] sm:$0xff]
    %v232 = vld [vmem:[#allocation2 + $0x350] sm:$0xff]
    %v233 = vld [vmem:[#allocation2 + $0x358] sm:$0xff]
    %v234 = vld [vmem:[#allocation2 + $0x360] sm:$0xf]
    %v235 = vld [vmem:[#allocation2 + $0x364] sm:$0xff]
    %v236 = vld [vmem:[#allocation2 + $0x36c] sm:$0xff]
    %v237 = vld [vmem:[#allocation2 + $0x374] sm:$0xff]
    %v238 = vld [vmem:[#allocation2 + $0x37c] sm:$0xf]
    %v239 = vld [vmem:[#allocation5] sm:$0xf]
    %v240 = vld [vmem:[#allocation5 + $0x4] sm:$0xf]
    %v241 = vld [vmem:[#allocation5 + $0x8] sm:$0xf]
    %v242 = vld [vmem:[#allocation5 + $0xc] sm:$0xf]
    %v243 = vld [vmem:[#allocation5 + $0x10] sm:$0xf]
    %v244 = vld [vmem:[#allocation5 + $0x14] sm:$0xf]
    %v245 = vld [vmem:[#allocation5 + $0x18] sm:$0xf]
    %v246 = vld [vmem:[#allocation5 + $0x1c] sm:$0xf]
    %v247 = vld [vmem:[#allocation5 + $0x20] sm:$0xf]
    %v248 = vld [vmem:[#allocation5 + $0x24] sm:$0xf]
    %v249 = vld [vmem:[#allocation5 + $0x28] sm:$0xf]
    %v250 = vld [vmem:[#allocation5 + $0x2c] sm:$0xf]
    %v251 = vld [vmem:[#allocation5 + $0x30] sm:$0xf]
    %v252 = vld [vmem:[#allocation5 + $0x34] sm:$0xf]
    %v253 = vld [vmem:[#allocation5 + $0x38] sm:$0xf]
    %v254 = vld [vmem:[#allocation5 + $0x3c] sm:$0xf]
    %v255 = vld [vmem:[#allocation5 + $0x40] sm:$0xf]
    %v256 = vld [vmem:[#allocation5 + $0x44] sm:$0xf]
    %v257 = vld [vmem:[#allocation5 + $0x48] sm:$0xf]
    %v258 = vld [vmem:[#allocation5 + $0x4c] sm:$0xf]
    %v259 = vld [vmem:[#allocation5 + $0x50] sm:$0xf]
    %v260 = vld [vmem:[#allocation5 + $0x54] sm:$0xf]
    %v261 = vld [vmem:[#allocation5 + $0x58] sm:$0xf]
    %v262 = vld [vmem:[#allocation5 + $0x5c] sm:$0xf]
    %v263 = vld [vmem:[#allocation5 + $0x60] sm:$0xf]
    %v264 = vld [vmem:[#allocation5 + $0x64] sm:$0xf]
    %v265 = vld [vmem:[#allocation5 + $0x68] sm:$0xf]
    %v266 = vld [vmem:[#allocation5 + $0x6c] sm:$0xf]
    %v267 = vld [vmem:[#allocation5 + $0x70] sm:$0xf]
    %v268 = vld [vmem:[#allocation5 + $0x74] sm:$0xf]
    %v269 = vld [vmem:[#allocation5 + $0x78] sm:$0xf]
    %v270 = vld [vmem:[#allocation5 + $0x7c] sm:$0xf]
    %v271 = vld [vmem:[#allocation5 + $0x80] sm:$0xf]
    %v272 = vld [vmem:[#allocation5 + $0x84] sm:$0xf]
    %v273 = vld [vmem:[#allocation5 + $0x88] sm:$0xf]
    %v274 = vld [vmem:[#allocation5 + $0x8c] sm:$0xf]
    %v275 = vld [vmem:[#allocation5 + $0x90] sm:$0xf]
    %v276 = vld [vmem:[#allocation5 + $0x94] sm:$0xf]
    %v277 = vld [vmem:[#allocation5 + $0x98] sm:$0xf]
    %v278 = vld [vmem:[#allocation5 + $0x9c] sm:$0xf]
    %v279 = vld [vmem:[#allocation5 + $0xa0] sm:$0xf]
    %v280 = vld [vmem:[#allocation5 + $0xa4] sm:$0xf]
    %v281 = vld [vmem:[#allocation5 + $0xa8] sm:$0xf]
    %v282 = vld [vmem:[#allocation5 + $0xac] sm:$0xf]
    %v283 = vld [vmem:[#allocation5 + $0xb0] sm:$0xf]
    %v284 = vld [vmem:[#allocation5 + $0xb4] sm:$0xf]
    %v285 = vld [vmem:[#allocation5 + $0xb8] sm:$0xf]
    %v286 = vld [vmem:[#allocation5 + $0xbc] sm:$0xf]
    %v287 = vld [vmem:[#allocation5 + $0xc0] sm:$0xf]
    %v288 = vld [vmem:[#allocation5 + $0xc4] sm:$0xf]
    %v289 = vld [vmem:[#allocation5 + $0xc8] sm:$0xf]
    %v290 = vld [vmem:[#allocation5 + $0xcc] sm:$0xf]
    %v291 = vld [vmem:[#allocation5 + $0xd0] sm:$0xf]
    %v292 = vld [vmem:[#allocation5 + $0xd4] sm:$0xf]
    %v293 = vld [vmem:[#allocation5 + $0xd8] sm:$0xf]
    %v294 = vld [vmem:[#allocation5 + $0xdc] sm:$0xf]
    %v295 = vld [vmem:[#allocation5 + $0xe0] sm:$0xf]
    %v296 = vld [vmem:[#allocation5 + $0xe4] sm:$0xf]
    %v297 = vld [vmem:[#allocation5 + $0xe8] sm:$0xf]
    %v298 = vld [vmem:[#allocation5 + $0xec] sm:$0xf]
    %v299 = vld [vmem:[#allocation5 + $0xf0] sm:$0xf]
    %v300 = vld [vmem:[#allocation5 + $0xf4] sm:$0xf]
    %v301 = vld [vmem:[#allocation5 + $0xf8] sm:$0xf]
    %v302 = vld [vmem:[#allocation5 + $0xfc] sm:$0xf]
    %v303 = vld [vmem:[#allocation5 + $0x100] sm:$0xf]
    %v304 = vld [vmem:[#allocation5 + $0x104] sm:$0xf]
    %v305 = vld [vmem:[#allocation5 + $0x108] sm:$0xf]
    %v306 = vld [vmem:[#allocation5 + $0x10c] sm:$0xf]
    %v307 = vld [vmem:[#allocation5 + $0x110] sm:$0xf]
    %v308 = vld [vmem:[#allocation5 + $0x114] sm:$0xf]
    %v309 = vld [vmem:[#allocation5 + $0x118] sm:$0xf]
    %v310 = vld [vmem:[#allocation5 + $0x11c] sm:$0xf]
    %v311 = vld [vmem:[#allocation5 + $0x120] sm:$0xf]
    %v312 = vld [vmem:[#allocation5 + $0x124] sm:$0xf]
    %v313 = vld [vmem:[#allocation5 + $0x128] sm:$0xf]
    %v314 = vld [vmem:[#allocation5 + $0x12c] sm:$0xf]
    %v315 = vld [vmem:[#allocation5 + $0x130] sm:$0xf]
    %v316 = vld [vmem:[#allocation5 + $0x134] sm:$0xf]
    %v317 = vld [vmem:[#allocation5 + $0x138] sm:$0xf]
    %v318 = vld [vmem:[#allocation5 + $0x13c] sm:$0xf]
    %v319 = vld [vmem:[#allocation5 + $0x140] sm:$0xf]
    %v320 = vld [vmem:[#allocation5 + $0x144] sm:$0xf]
    %v321 = vld [vmem:[#allocation5 + $0x148] sm:$0xf]
    %v322 = vld [vmem:[#allocation5 + $0x14c] sm:$0xf]
    %v323 = vld [vmem:[#allocation5 + $0x150] sm:$0xf]
    %v324 = vld [vmem:[#allocation5 + $0x154] sm:$0xf]
    %v325 = vld [vmem:[#allocation5 + $0x158] sm:$0xf]
    %v326 = vld [vmem:[#allocation5 + $0x15c] sm:$0xf]
    %v327 = vld [vmem:[#allocation5 + $0x160] sm:$0xf]
    %v328 = vld [vmem:[#allocation5 + $0x164] sm:$0xf]
    %v329 = vld [vmem:[#allocation5 + $0x168] sm:$0xf]
    %v330 = vld [vmem:[#allocation5 + $0x16c] sm:$0xf]
    %v331 = vld [vmem:[#allocation5 + $0x170] sm:$0xf]
    %v332 = vld [vmem:[#allocation5 + $0x174] sm:$0xf]
    %v333 = vld [vmem:[#allocation5 + $0x178] sm:$0xf]
    %v334 = vld [vmem:[#allocation5 + $0x17c] sm:$0xf]
    %v335 = vld [vmem:[#allocation5 + $0x180] sm:$0xf]
    %v336 = vld [vmem:[#allocation5 + $0x184] sm:$0xf]
    %v337 = vld [vmem:[#allocation5 + $0x188] sm:$0xf]
    %v338 = vld [vmem:[#allocation5 + $0x18c] sm:$0xf]
    %v339 = vld [vmem:[#allocation5 + $0x190] sm:$0xf]
    %v340 = vld [vmem:[#allocation5 + $0x194] sm:$0xf]
    %v341 = vld [vmem:[#allocation5 + $0x198] sm:$0xf]
    %v342 = vld [vmem:[#allocation5 + $0x19c] sm:$0xf]
    %v343 = vld [vmem:[#allocation5 + $0x1a0] sm:$0xf]
    %v344 = vld [vmem:[#allocation5 + $0x1a4] sm:$0xf]
    %v345 = vld [vmem:[#allocation5 + $0x1a8] sm:$0xf]
    %v346 = vld [vmem:[#allocation5 + $0x1ac] sm:$0xf]
    %v347 = vld [vmem:[#allocation5 + $0x1b0] sm:$0xf]
    %v348 = vld [vmem:[#allocation5 + $0x1b4] sm:$0xf]
    %v349 = vld [vmem:[#allocation5 + $0x1b8] sm:$0xf]
    %v350 = vld [vmem:[#allocation5 + $0x1bc] sm:$0xf]
    %v351 = vld [vmem:[%s2] sm:$0x1]
    %v353 = vperm.slane %v351, 0
    %v483 = vunpack.c.l.b16 %v111
    %v484 = vunpack.c.h.b16 %v111
    %v485 = vunpack.c.l.b16 %v112
    %v486 = vunpack.c.h.b16 %v112
    %v487 = vunpack.c.l.b16 %v113
    %v488 = vunpack.c.h.b16 %v113
    %v489 = vunpack.c.l.b16 %v114
    %v490 = vunpack.c.l.b16 %v115
    %v491 = vunpack.c.h.b16 %v115
    %v492 = vunpack.c.l.b16 %v116
    %v493 = vunpack.c.h.b16 %v116
    %v494 = vunpack.c.l.b16 %v117
    %v495 = vunpack.c.h.b16 %v117
    %v496 = vunpack.c.l.b16 %v118
    %v497 = vunpack.c.l.b16 %v119
    %v498 = vunpack.c.h.b16 %v119
    %v499 = vunpack.c.l.b16 %v120
    %v500 = vunpack.c.h.b16 %v120
    %v501 = vunpack.c.l.b16 %v121
    %v502 = vunpack.c.h.b16 %v121
    %v503 = vunpack.c.l.b16 %v122
    %v504 = vunpack.c.l.b16 %v123
    %v505 = vunpack.c.h.b16 %v123
    %v506 = vunpack.c.l.b16 %v124
    %v507 = vunpack.c.h.b16 %v124
    %v508 = vunpack.c.l.b16 %v125
    %v509 = vunpack.c.h.b16 %v125
    %v510 = vunpack.c.l.b16 %v126
    %v511 = vunpack.c.l.b16 %v127
    %v512 = vunpack.c.h.b16 %v127
    %v513 = vunpack.c.l.b16 %v128
    %v514 = vunpack.c.h.b16 %v128
    %v515 = vunpack.c.l.b16 %v129
    %v516 = vunpack.c.h.b16 %v129
    %v517 = vunpack.c.l.b16 %v130
    %v518 = vunpack.c.l.b16 %v131
    %v519 = vunpack.c.h.b16 %v131
    %v520 = vunpack.c.l.b16 %v132
    %v521 = vunpack.c.h.b16 %v132
    %v522 = vunpack.c.l.b16 %v133
    %v523 = vunpack.c.h.b16 %v133
    %v524 = vunpack.c.l.b16 %v134
    %v525 = vunpack.c.l.b16 %v135
    %v526 = vunpack.c.h.b16 %v135
    %v527 = vunpack.c.l.b16 %v136
    %v528 = vunpack.c.h.b16 %v136
    %v529 = vunpack.c.l.b16 %v137
    %v530 = vunpack.c.h.b16 %v137
    %v531 = vunpack.c.l.b16 %v138
    %v532 = vunpack.c.l.b16 %v139
    %v533 = vunpack.c.h.b16 %v139
    %v534 = vunpack.c.l.b16 %v140
    %v535 = vunpack.c.h.b16 %v140
    %v536 = vunpack.c.l.b16 %v141
    %v537 = vunpack.c.h.b16 %v141
    %v538 = vunpack.c.l.b16 %v142
    %v539 = vunpack.c.l.b16 %v143
    %v540 = vunpack.c.h.b16 %v143
    %v541 = vunpack.c.l.b16 %v144
    %v542 = vunpack.c.h.b16 %v144
    %v543 = vunpack.c.l.b16 %v145
    %v544 = vunpack.c.h.b16 %v145
    %v545 = vunpack.c.l.b16 %v146
    %v546 = vunpack.c.l.b16 %v147
    %v547 = vunpack.c.h.b16 %v147
    %v548 = vunpack.c.l.b16 %v148
    %v549 = vunpack.c.h.b16 %v148
    %v550 = vunpack.c.l.b16 %v149
    %v551 = vunpack.c.h.b16 %v149
    %v552 = vunpack.c.l.b16 %v150
    %v553 = vunpack.c.l.b16 %v151
    %v554 = vunpack.c.h.b16 %v151
    %v555 = vunpack.c.l.b16 %v152
    %v556 = vunpack.c.h.b16 %v152
    %v557 = vunpack.c.l.b16 %v153
    %v558 = vunpack.c.h.b16 %v153
    %v559 = vunpack.c.l.b16 %v154
    %v560 = vunpack.c.l.b16 %v155
    %v561 = vunpack.c.h.b16 %v155
    %v562 = vunpack.c.l.b16 %v156
    %v563 = vunpack.c.h.b16 %v156
    %v564 = vunpack.c.l.b16 %v157
    %v565 = vunpack.c.h.b16 %v157
    %v566 = vunpack.c.l.b16 %v158
    %v567 = vunpack.c.l.b16 %v159
    %v568 = vunpack.c.h.b16 %v159
    %v569 = vunpack.c.l.b16 %v160
    %v570 = vunpack.c.h.b16 %v160
    %v571 = vunpack.c.l.b16 %v161
    %v572 = vunpack.c.h.b16 %v161
    %v573 = vunpack.c.l.b16 %v162
    %v574 = vunpack.c.l.b16 %v163
    %v575 = vunpack.c.h.b16 %v163
    %v576 = vunpack.c.l.b16 %v164
    %v577 = vunpack.c.h.b16 %v164
    %v578 = vunpack.c.l.b16 %v165
    %v579 = vunpack.c.h.b16 %v165
    %v580 = vunpack.c.l.b16 %v166
    %v581 = vunpack.c.l.b16 %v167
    %v582 = vunpack.c.h.b16 %v167
    %v583 = vunpack.c.l.b16 %v168
    %v584 = vunpack.c.h.b16 %v168
    %v585 = vunpack.c.l.b16 %v169
    %v586 = vunpack.c.h.b16 %v169
    %v587 = vunpack.c.l.b16 %v170
    %v588 = vunpack.c.l.b16 %v171
    %v589 = vunpack.c.h.b16 %v171
    %v590 = vunpack.c.l.b16 %v172
    %v591 = vunpack.c.h.b16 %v172
    %v592 = vunpack.c.l.b16 %v173
    %v593 = vunpack.c.h.b16 %v173
    %v594 = vunpack.c.l.b16 %v174
    %v595 = vunpack.c.l.b16 %v175
    %v596 = vunpack.c.h.b16 %v175
    %v597 = vunpack.c.l.b16 %v176
    %v598 = vunpack.c.h.b16 %v176
    %v599 = vunpack.c.l.b16 %v177
    %v600 = vunpack.c.h.b16 %v177
    %v601 = vunpack.c.l.b16 %v178
    %v602 = vunpack.c.l.b16 %v179
    %v603 = vunpack.c.h.b16 %v179
    %v604 = vunpack.c.l.b16 %v180
    %v605 = vunpack.c.h.b16 %v180
    %v606 = vunpack.c.l.b16 %v181
    %v607 = vunpack.c.h.b16 %v181
    %v608 = vunpack.c.l.b16 %v182
    %v609 = vunpack.c.l.b16 %v183
    %v610 = vunpack.c.h.b16 %v183
    %v611 = vunpack.c.l.b16 %v184
    %v612 = vunpack.c.h.b16 %v184
    %v613 = vunpack.c.l.b16 %v185
    %v614 = vunpack.c.h.b16 %v185
    %v615 = vunpack.c.l.b16 %v186
    %v616 = vunpack.c.l.b16 %v187
    %v617 = vunpack.c.h.b16 %v187
    %v618 = vunpack.c.l.b16 %v188
    %v619 = vunpack.c.h.b16 %v188
    %v620 = vunpack.c.l.b16 %v189
    %v621 = vunpack.c.h.b16 %v189
    %v622 = vunpack.c.l.b16 %v190
    %v623 = vunpack.c.l.b16 %v191
    %v624 = vunpack.c.h.b16 %v191
    %v625 = vunpack.c.l.b16 %v192
    %v626 = vunpack.c.h.b16 %v192
    %v627 = vunpack.c.l.b16 %v193
    %v628 = vunpack.c.h.b16 %v193
    %v629 = vunpack.c.l.b16 %v194
    %v630 = vunpack.c.l.b16 %v195
    %v631 = vunpack.c.h.b16 %v195
    %v632 = vunpack.c.l.b16 %v196
    %v633 = vunpack.c.h.b16 %v196
    %v634 = vunpack.c.l.b16 %v197
    %v635 = vunpack.c.h.b16 %v197
    %v636 = vunpack.c.l.b16 %v198
    %v637 = vunpack.c.l.b16 %v199
    %v638 = vunpack.c.h.b16 %v199
    %v639 = vunpack.c.l.b16 %v200
    %v640 = vunpack.c.h.b16 %v200
    %v641 = vunpack.c.l.b16 %v201
    %v642 = vunpack.c.h.b16 %v201
    %v643 = vunpack.c.l.b16 %v202
    %v644 = vunpack.c.l.b16 %v203
    %v645 = vunpack.c.h.b16 %v203
    %v646 = vunpack.c.l.b16 %v204
    %v647 = vunpack.c.h.b16 %v204
    %v648 = vunpack.c.l.b16 %v205
    %v649 = vunpack.c.h.b16 %v205
    %v650 = vunpack.c.l.b16 %v206
    %v651 = vunpack.c.l.b16 %v207
    %v652 = vunpack.c.h.b16 %v207
    %v653 = vunpack.c.l.b16 %v208
    %v654 = vunpack.c.h.b16 %v208
    %v655 = vunpack.c.l.b16 %v209
    %v656 = vunpack.c.h.b16 %v209
    %v657 = vunpack.c.l.b16 %v210
    %v658 = vunpack.c.l.b16 %v211
    %v659 = vunpack.c.h.b16 %v211
    %v660 = vunpack.c.l.b16 %v212
    %v661 = vunpack.c.h.b16 %v212
    %v662 = vunpack.c.l.b16 %v213
    %v663 = vunpack.c.h.b16 %v213
    %v664 = vunpack.c.l.b16 %v214
    %v665 = vunpack.c.l.b16 %v215
    %v666 = vunpack.c.h.b16 %v215
    %v667 = vunpack.c.l.b16 %v216
    %v668 = vunpack.c.h.b16 %v216
    %v669 = vunpack.c.l.b16 %v217
    %v670 = vunpack.c.h.b16 %v217
    %v671 = vunpack.c.l.b16 %v218
    %v672 = vunpack.c.l.b16 %v219
    %v673 = vunpack.c.h.b16 %v219
    %v674 = vunpack.c.l.b16 %v220
    %v675 = vunpack.c.h.b16 %v220
    %v676 = vunpack.c.l.b16 %v221
    %v677 = vunpack.c.h.b16 %v221
    %v678 = vunpack.c.l.b16 %v222
    %v679 = vunpack.c.l.b16 %v223
    %v680 = vunpack.c.h.b16 %v223
    %v681 = vunpack.c.l.b16 %v224
    %v682 = vunpack.c.h.b16 %v224
    %v683 = vunpack.c.l.b16 %v225
    %v684 = vunpack.c.h.b16 %v225
    %v685 = vunpack.c.l.b16 %v226
    %v686 = vunpack.c.l.b16 %v227
    %v687 = vunpack.c.h.b16 %v227
    %v688 = vunpack.c.l.b16 %v228
    %v689 = vunpack.c.h.b16 %v228
    %v690 = vunpack.c.l.b16 %v229
    %v691 = vunpack.c.h.b16 %v229
    %v692 = vunpack.c.l.b16 %v230
    %v693 = vunpack.c.l.b16 %v231
    %v694 = vunpack.c.h.b16 %v231
    %v695 = vunpack.c.l.b16 %v232
    %v696 = vunpack.c.h.b16 %v232
    %v697 = vunpack.c.l.b16 %v233
    %v698 = vunpack.c.h.b16 %v233
    %v699 = vunpack.c.l.b16 %v234
    %v700 = vunpack.c.l.b16 %v235
    %v701 = vunpack.c.h.b16 %v235
    %v702 = vunpack.c.l.b16 %v236
    %v703 = vunpack.c.h.b16 %v236
    %v704 = vunpack.c.l.b16 %v237
    %v705 = vunpack.c.h.b16 %v237
    %v706 = vunpack.c.l.b16 %v238
    %v707 = vpack.c.b16 %v490, %v483
    %v708 = vpack.c.b16 %v491, %v484
    %v709 = vpack.c.b16 %v492, %v485
    %v710 = vpack.c.b16 %v493, %v486
    %v711 = vpack.c.b16 %v494, %v487
    %v712 = vpack.c.b16 %v495, %v488
    %v713 = vpack.c.b16 %v496, %v489
    %v714 = vpack.c.b16 %v504, %v497
    %v715 = vpack.c.b16 %v505, %v498
    %v716 = vpack.c.b16 %v506, %v499
    %v717 = vpack.c.b16 %v507, %v500
    %v718 = vpack.c.b16 %v508, %v501
    %v719 = vpack.c.b16 %v509, %v502
    %v720 = vpack.c.b16 %v510, %v503
    %v721 = vpack.c.b16 %v518, %v511
    %v722 = vpack.c.b16 %v519, %v512
    %v723 = vpack.c.b16 %v520, %v513
    %v724 = vpack.c.b16 %v521, %v514
    %v725 = vpack.c.b16 %v522, %v515
    %v726 = vpack.c.b16 %v523, %v516
    %v727 = vpack.c.b16 %v524, %v517
    %v728 = vpack.c.b16 %v532, %v525
    %v729 = vpack.c.b16 %v533, %v526
    %v730 = vpack.c.b16 %v534, %v527
    %v731 = vpack.c.b16 %v535, %v528
    %v732 = vpack.c.b16 %v536, %v529
    %v733 = vpack.c.b16 %v537, %v530
    %v734 = vpack.c.b16 %v538, %v531
    %v735 = vpack.c.b16 %v546, %v539
    %v736 = vpack.c.b16 %v547, %v540
    %v737 = vpack.c.b16 %v548, %v541
    %v738 = vpack.c.b16 %v549, %v542
    %v739 = vpack.c.b16 %v550, %v543
    %v740 = vpack.c.b16 %v551, %v544
    %v741 = vpack.c.b16 %v552, %v545
    %v742 = vpack.c.b16 %v560, %v553
    %v743 = vpack.c.b16 %v561, %v554
    %v744 = vpack.c.b16 %v562, %v555
    %v745 = vpack.c.b16 %v563, %v556
    %v746 = vpack.c.b16 %v564, %v557
    %v747 = vpack.c.b16 %v565, %v558
    %v748 = vpack.c.b16 %v566, %v559
    %v749 = vpack.c.b16 %v574, %v567
    %v750 = vpack.c.b16 %v575, %v568
    %v751 = vpack.c.b16 %v576, %v569
    %v752 = vpack.c.b16 %v577, %v570
    %v753 = vpack.c.b16 %v578, %v571
    %v754 = vpack.c.b16 %v579, %v572
    %v755 = vpack.c.b16 %v580, %v573
    %v756 = vpack.c.b16 %v588, %v581
    %v757 = vpack.c.b16 %v589, %v582
    %v758 = vpack.c.b16 %v590, %v583
    %v759 = vpack.c.b16 %v591, %v584
    %v760 = vpack.c.b16 %v592, %v585
    %v761 = vpack.c.b16 %v593, %v586
    %v762 = vpack.c.b16 %v594, %v587
    %v763 = vpack.c.b16 %v602, %v595
    %v764 = vpack.c.b16 %v603, %v596
    %v765 = vpack.c.b16 %v604, %v597
    %v766 = vpack.c.b16 %v605, %v598
    %v767 = vpack.c.b16 %v606, %v599
    %v768 = vpack.c.b16 %v607, %v600
    %v769 = vpack.c.b16 %v608, %v601
    %v770 = vpack.c.b16 %v616, %v609
    %v771 = vpack.c.b16 %v617, %v610
    %v772 = vpack.c.b16 %v618, %v611
    %v773 = vpack.c.b16 %v619, %v612
    %v774 = vpack.c.b16 %v620, %v613
    %v775 = vpack.c.b16 %v621, %v614
    %v776 = vpack.c.b16 %v622, %v615
    %v777 = vpack.c.b16 %v630, %v623
    %v778 = vpack.c.b16 %v631, %v624
    %v779 = vpack.c.b16 %v632, %v625
    %v780 = vpack.c.b16 %v633, %v626
    %v781 = vpack.c.b16 %v634, %v627
    %v782 = vpack.c.b16 %v635, %v628
    %v783 = vpack.c.b16 %v636, %v629
    %v784 = vpack.c.b16 %v644, %v637
    %v785 = vpack.c.b16 %v645, %v638
    %v786 = vpack.c.b16 %v646, %v639
    %v787 = vpack.c.b16 %v647, %v640
    %v788 = vpack.c.b16 %v648, %v641
    %v789 = vpack.c.b16 %v649, %v642
    %v790 = vpack.c.b16 %v650, %v643
    %v791 = vpack.c.b16 %v658, %v651
    %v792 = vpack.c.b16 %v659, %v652
    %v793 = vpack.c.b16 %v660, %v653
    %v794 = vpack.c.b16 %v661, %v654
    %v795 = vpack.c.b16 %v662, %v655
    %v796 = vpack.c.b16 %v663, %v656
    %v797 = vpack.c.b16 %v664, %v657
    %v798 = vpack.c.b16 %v672, %v665
    %v799 = vpack.c.b16 %v673, %v666
    %v800 = vpack.c.b16 %v674, %v667
    %v801 = vpack.c.b16 %v675, %v668
    %v802 = vpack.c.b16 %v676, %v669
    %v803 = vpack.c.b16 %v677, %v670
    %v804 = vpack.c.b16 %v678, %v671
    %v805 = vpack.c.b16 %v686, %v679
    %v806 = vpack.c.b16 %v687, %v680
    %v807 = vpack.c.b16 %v688, %v681
    %v808 = vpack.c.b16 %v689, %v682
    %v809 = vpack.c.b16 %v690, %v683
    %v810 = vpack.c.b16 %v691, %v684
    %v811 = vpack.c.b16 %v692, %v685
    %v812 = vpack.c.b16 %v700, %v693
    %v813 = vpack.c.b16 %v701, %v694
    %v814 = vpack.c.b16 %v702, %v695
    %v815 = vpack.c.b16 %v703, %v696
    %v816 = vpack.c.b16 %v704, %v697
    %v817 = vpack.c.b16 %v705, %v698
    %v818 = vpack.c.b16 %v706, %v699
    %v1043 = vunpack.c.l.b16 %v239
    %v1044 = vunpack.c.l.b16 %v240
    %v1045 = vunpack.c.l.b16 %v241
    %v1046 = vunpack.c.l.b16 %v242
    %v1047 = vunpack.c.l.b16 %v243
    %v1048 = vunpack.c.l.b16 %v244
    %v1049 = vunpack.c.l.b16 %v245
    %v1050 = vunpack.c.l.b16 %v246
    %v1051 = vunpack.c.l.b16 %v247
    %v1052 = vunpack.c.l.b16 %v248
    %v1053 = vunpack.c.l.b16 %v249
    %v1054 = vunpack.c.l.b16 %v250
    %v1055 = vunpack.c.l.b16 %v251
    %v1056 = vunpack.c.l.b16 %v252
    %v1057 = vunpack.c.l.b16 %v253
    %v1058 = vunpack.c.l.b16 %v254
    %v1059 = vunpack.c.l.b16 %v255
    %v1060 = vunpack.c.l.b16 %v256
    %v1061 = vunpack.c.l.b16 %v257
    %v1062 = vunpack.c.l.b16 %v258
    %v1063 = vunpack.c.l.b16 %v259
    %v1064 = vunpack.c.l.b16 %v260
    %v1065 = vunpack.c.l.b16 %v261
    %v1066 = vunpack.c.l.b16 %v262
    %v1067 = vunpack.c.l.b16 %v263
    %v1068 = vunpack.c.l.b16 %v264
    %v1069 = vunpack.c.l.b16 %v265
    %v1070 = vunpack.c.l.b16 %v266
    %v1071 = vunpack.c.l.b16 %v267
    %v1072 = vunpack.c.l.b16 %v268
    %v1073 = vunpack.c.l.b16 %v269
    %v1074 = vunpack.c.l.b16 %v270
    %v1075 = vunpack.c.l.b16 %v271
    %v1076 = vunpack.c.l.b16 %v272
    %v1077 = vunpack.c.l.b16 %v273
    %v1078 = vunpack.c.l.b16 %v274
    %v1079 = vunpack.c.l.b16 %v275
    %v1080 = vunpack.c.l.b16 %v276
    %v1081 = vunpack.c.l.b16 %v277
    %v1082 = vunpack.c.l.b16 %v278
    %v1083 = vunpack.c.l.b16 %v279
    %v1084 = vunpack.c.l.b16 %v280
    %v1085 = vunpack.c.l.b16 %v281
    %v1086 = vunpack.c.l.b16 %v282
    %v1087 = vunpack.c.l.b16 %v283
    %v1088 = vunpack.c.l.b16 %v284
    %v1089 = vunpack.c.l.b16 %v285
    %v1090 = vunpack.c.l.b16 %v286
    %v1091 = vunpack.c.l.b16 %v287
    %v1092 = vunpack.c.l.b16 %v288
    %v1093 = vunpack.c.l.b16 %v289
    %v1094 = vunpack.c.l.b16 %v290
    %v1095 = vunpack.c.l.b16 %v291
    %v1096 = vunpack.c.l.b16 %v292
    %v1097 = vunpack.c.l.b16 %v293
    %v1098 = vunpack.c.l.b16 %v294
    %v1099 = vunpack.c.l.b16 %v295
    %v1100 = vunpack.c.l.b16 %v296
    %v1101 = vunpack.c.l.b16 %v297
    %v1102 = vunpack.c.l.b16 %v298
    %v1103 = vunpack.c.l.b16 %v299
    %v1104 = vunpack.c.l.b16 %v300
    %v1105 = vunpack.c.l.b16 %v301
    %v1106 = vunpack.c.l.b16 %v302
    %v1107 = vunpack.c.l.b16 %v303
    %v1108 = vunpack.c.l.b16 %v304
    %v1109 = vunpack.c.l.b16 %v305
    %v1110 = vunpack.c.l.b16 %v306
    %v1111 = vunpack.c.l.b16 %v307
    %v1112 = vunpack.c.l.b16 %v308
    %v1113 = vunpack.c.l.b16 %v309
    %v1114 = vunpack.c.l.b16 %v310
    %v1115 = vunpack.c.l.b16 %v311
    %v1116 = vunpack.c.l.b16 %v312
    %v1117 = vunpack.c.l.b16 %v313
    %v1118 = vunpack.c.l.b16 %v314
    %v1119 = vunpack.c.l.b16 %v315
    %v1120 = vunpack.c.l.b16 %v316
    %v1121 = vunpack.c.l.b16 %v317
    %v1122 = vunpack.c.l.b16 %v318
    %v1123 = vunpack.c.l.b16 %v319
    %v1124 = vunpack.c.l.b16 %v320
    %v1125 = vunpack.c.l.b16 %v321
    %v1126 = vunpack.c.l.b16 %v322
    %v1127 = vunpack.c.l.b16 %v323
    %v1128 = vunpack.c.l.b16 %v324
    %v1129 = vunpack.c.l.b16 %v325
    %v1130 = vunpack.c.l.b16 %v326
    %v1131 = vunpack.c.l.b16 %v327
    %v1132 = vunpack.c.l.b16 %v328
    %v1133 = vunpack.c.l.b16 %v329
    %v1134 = vunpack.c.l.b16 %v330
    %v1135 = vunpack.c.l.b16 %v331
    %v1136 = vunpack.c.l.b16 %v332
    %v1137 = vunpack.c.l.b16 %v333
    %v1138 = vunpack.c.l.b16 %v334
    %v1139 = vunpack.c.l.b16 %v335
    %v1140 = vunpack.c.l.b16 %v336
    %v1141 = vunpack.c.l.b16 %v337
    %v1142 = vunpack.c.l.b16 %v338
    %v1143 = vunpack.c.l.b16 %v339
    %v1144 = vunpack.c.l.b16 %v340
    %v1145 = vunpack.c.l.b16 %v341
    %v1146 = vunpack.c.l.b16 %v342
    %v1147 = vunpack.c.l.b16 %v343
    %v1148 = vunpack.c.l.b16 %v344
    %v1149 = vunpack.c.l.b16 %v345
    %v1150 = vunpack.c.l.b16 %v346
    %v1151 = vunpack.c.l.b16 %v347
    %v1152 = vunpack.c.l.b16 %v348
    %v1153 = vunpack.c.l.b16 %v349
    %v1154 = vunpack.c.l.b16 %v350
    %v1155 = vpack.c.b16 %v1044, %v1043
    %v1156 = vpack.c.b16 %v1046, %v1045
    %v1157 = vpack.c.b16 %v1048, %v1047
    %v1158 = vpack.c.b16 %v1050, %v1049
    %v1159 = vpack.c.b16 %v1052, %v1051
    %v1160 = vpack.c.b16 %v1054, %v1053
    %v1161 = vpack.c.b16 %v1056, %v1055
    %v1162 = vpack.c.b16 %v1058, %v1057
    %v1163 = vpack.c.b16 %v1060, %v1059
    %v1164 = vpack.c.b16 %v1062, %v1061
    %v1165 = vpack.c.b16 %v1064, %v1063
    %v1166 = vpack.c.b16 %v1066, %v1065
    %v1167 = vpack.c.b16 %v1068, %v1067
    %v1168 = vpack.c.b16 %v1070, %v1069
    %v1169 = vpack.c.b16 %v1072, %v1071
    %v1170 = vpack.c.b16 %v1074, %v1073
    %v1171 = vpack.c.b16 %v1076, %v1075
    %v1172 = vpack.c.b16 %v1078, %v1077
    %v1173 = vpack.c.b16 %v1080, %v1079
    %v1174 = vpack.c.b16 %v1082, %v1081
    %v1175 = vpack.c.b16 %v1084, %v1083
    %v1176 = vpack.c.b16 %v1086, %v1085
    %v1177 = vpack.c.b16 %v1088, %v1087
    %v1178 = vpack.c.b16 %v1090, %v1089
    %v1179 = vpack.c.b16 %v1092, %v1091
    %v1180 = vpack.c.b16 %v1094, %v1093
    %v1181 = vpack.c.b16 %v1096, %v1095
    %v1182 = vpack.c.b16 %v1098, %v1097
    %v1183 = vpack.c.b16 %v1100, %v1099
    %v1184 = vpack.c.b16 %v1102, %v1101
    %v1185 = vpack.c.b16 %v1104, %v1103
    %v1186 = vpack.c.b16 %v1106, %v1105
    %v1187 = vpack.c.b16 %v1108, %v1107
    %v1188 = vpack.c.b16 %v1110, %v1109
    %v1189 = vpack.c.b16 %v1112, %v1111
    %v1190 = vpack.c.b16 %v1114, %v1113
    %v1191 = vpack.c.b16 %v1116, %v1115
    %v1192 = vpack.c.b16 %v1118, %v1117
    %v1193 = vpack.c.b16 %v1120, %v1119
    %v1194 = vpack.c.b16 %v1122, %v1121
    %v1195 = vpack.c.b16 %v1124, %v1123
    %v1196 = vpack.c.b16 %v1126, %v1125
    %v1197 = vpack.c.b16 %v1128, %v1127
    %v1198 = vpack.c.b16 %v1130, %v1129
    %v1199 = vpack.c.b16 %v1132, %v1131
    %v1200 = vpack.c.b16 %v1134, %v1133
    %v1201 = vpack.c.b16 %v1136, %v1135
    %v1202 = vpack.c.b16 %v1138, %v1137
    %v1203 = vpack.c.b16 %v1140, %v1139
    %v1204 = vpack.c.b16 %v1142, %v1141
    %v1205 = vpack.c.b16 %v1144, %v1143
    %v1206 = vpack.c.b16 %v1146, %v1145
    %v1207 = vpack.c.b16 %v1148, %v1147
    %v1208 = vpack.c.b16 %v1150, %v1149
    %v1209 = vpack.c.b16 %v1152, %v1151
    %v1210 = vpack.c.b16 %v1154, %v1153
    %1267 = vmatpush.bf16.msra.mxu0 %v1162
    %1268 = vmatpush.bf16.msra.mxu0 %v1161
    %1269 = vmatpush.bf16.msra.mxu0 %v1160
    %1270 = vmatpush.bf16.msra.mxu0 %v1159
    %1271 = vmatpush.bf16.msra.mxu0 %v1158
    %1272 = vmatpush.bf16.msra.mxu0 %v1157
    %1273 = vmatpush.bf16.msra.mxu0 %v1156
    %1274 = vmatpush.bf16.msra.mxu0 %v1155
    %1275 = vmatmul.bf16.gmra.mxu0 %v707
    %v1276 = vpop.f32.mrf.mxu0
    %v1277 = vadd.f32 %v353, %v1276
    %v1278 = vpop.f32.mrf.mxu0
    %v1279 = vadd.f32 %v353, %v1278
    %1280 = vmatmul.bf16.gmra.mxu0 %v714
    %v1281 = vpop.f32.mrf.mxu0
    %v1282 = vadd.f32 %v353, %v1281
    %v1283 = vpop.f32.mrf.mxu0
    %v1284 = vadd.f32 %v353, %v1283
    %1285 = vmatmul.bf16.gmra.mxu0 %v721
    %v1286 = vpop.f32.mrf.mxu0
    %v1287 = vadd.f32 %v353, %v1286
    %v1288 = vpop.f32.mrf.mxu0
    %v1289 = vadd.f32 %v353, %v1288
    %1290 = vmatmul.bf16.gmra.mxu0 %v728
    %v1291 = vpop.f32.mrf.mxu0
    %v1292 = vadd.f32 %v353, %v1291
    %v1293 = vpop.f32.mrf.mxu0
    %v1294 = vadd.f32 %v353, %v1293
    %1295 = vmatmul.bf16.gmra.mxu0 %v735
    %v1296 = vpop.f32.mrf.mxu0
    %v1297 = vadd.f32 %v353, %v1296
    %v1298 = vpop.f32.mrf.mxu0
    %v1299 = vadd.f32 %v353, %v1298
    %1300 = vmatmul.bf16.gmra.mxu0 %v742
    %v1301 = vpop.f32.mrf.mxu0
    %v1302 = vadd.f32 %v353, %v1301
    %v1303 = vpop.f32.mrf.mxu0
    %v1304 = vadd.f32 %v353, %v1303
    %1305 = vmatmul.bf16.gmra.mxu0 %v749
    %v1306 = vpop.f32.mrf.mxu0
    %v1307 = vadd.f32 %v353, %v1306
    %v1308 = vpop.f32.mrf.mxu0
    %v1309 = vadd.f32 %v353, %v1308
    %1310 = vmatmul.bf16.gmra.mxu0 %v756
    %v1311 = vpop.f32.mrf.mxu0
    %v1312 = vadd.f32 %v353, %v1311
    %v1313 = vpop.f32.mrf.mxu0
    %v1314 = vadd.f32 %v353, %v1313
    %1315 = vmatmul.bf16.gmra.mxu0 %v763
    %v1316 = vpop.f32.mrf.mxu0
    %v1317 = vadd.f32 %v353, %v1316
    %v1318 = vpop.f32.mrf.mxu0
    %v1319 = vadd.f32 %v353, %v1318
    %1320 = vmatmul.bf16.gmra.mxu0 %v770
    %v1321 = vpop.f32.mrf.mxu0
    %v1322 = vadd.f32 %v353, %v1321
    %v1323 = vpop.f32.mrf.mxu0
    %v1324 = vadd.f32 %v353, %v1323
    %1325 = vmatmul.bf16.gmra.mxu0 %v777
    %v1326 = vpop.f32.mrf.mxu0
    %v1327 = vadd.f32 %v353, %v1326
    %v1328 = vpop.f32.mrf.mxu0
    %v1329 = vadd.f32 %v353, %v1328
    %1330 = vmatmul.bf16.gmra.mxu0 %v784
    %v1331 = vpop.f32.mrf.mxu0
    %v1332 = vadd.f32 %v353, %v1331
    %v1333 = vpop.f32.mrf.mxu0
    %v1334 = vadd.f32 %v353, %v1333
    %1335 = vmatmul.bf16.gmra.mxu0 %v791
    %v1336 = vpop.f32.mrf.mxu0
    %v1337 = vadd.f32 %v353, %v1336
    %v1338 = vpop.f32.mrf.mxu0
    %v1339 = vadd.f32 %v353, %v1338
    %1340 = vmatmul.bf16.gmra.mxu0 %v798
    %v1341 = vpop.f32.mrf.mxu0
    %v1342 = vadd.f32 %v353, %v1341
    %v1343 = vpop.f32.mrf.mxu0
    %v1344 = vadd.f32 %v353, %v1343
    %1345 = vmatmul.bf16.gmra.mxu0 %v805
    %v1346 = vpop.f32.mrf.mxu0
    %v1347 = vadd.f32 %v353, %v1346
    %v1348 = vpop.f32.mrf.mxu0
    %v1349 = vadd.f32 %v353, %v1348
    %1350 = vmatmul.bf16.gmra.mxu0 %v812
    %v1351 = vpop.f32.mrf.mxu0
    %v1352 = vadd.f32 %v353, %v1351
    %v1353 = vpop.f32.mrf.mxu0
    %v1354 = vadd.f32 %v353, %v1353
    %1355 = vdwg.mxu0
    %1356 = vmatpush.bf16.msra.mxu0 %v1170
    %1357 = vmatpush.bf16.msra.mxu0 %v1169
    %1358 = vmatpush.bf16.msra.mxu0 %v1168
    %1359 = vmatpush.bf16.msra.mxu0 %v1167
    %1360 = vmatpush.bf16.msra.mxu0 %v1166
    %1361 = vmatpush.bf16.msra.mxu0 %v1165
    %1362 = vmatpush.bf16.msra.mxu0 %v1164
    %1363 = vmatpush.bf16.msra.mxu0 %v1163
    %1364 = vmatmul.bf16.gmra.mxu0 %v708
    %v1365 = vpop.f32.mrf.mxu0
    %v1366 = vadd.f32 %v1277, %v1365
    %v1367 = vpop.f32.mrf.mxu0
    %v1368 = vadd.f32 %v1279, %v1367
    %1369 = vmatmul.bf16.gmra.mxu0 %v715
    %v1370 = vpop.f32.mrf.mxu0
    %v1371 = vadd.f32 %v1282, %v1370
    %v1372 = vpop.f32.mrf.mxu0
    %v1373 = vadd.f32 %v1284, %v1372
    %1374 = vmatmul.bf16.gmra.mxu0 %v722
    %v1375 = vpop.f32.mrf.mxu0
    %v1376 = vadd.f32 %v1287, %v1375
    %v1377 = vpop.f32.mrf.mxu0
    %v1378 = vadd.f32 %v1289, %v1377
    %1379 = vmatmul.bf16.gmra.mxu0 %v729
    %v1380 = vpop.f32.mrf.mxu0
    %v1381 = vadd.f32 %v1292, %v1380
    %v1382 = vpop.f32.mrf.mxu0
    %v1383 = vadd.f32 %v1294, %v1382
    %1384 = vmatmul.bf16.gmra.mxu0 %v736
    %v1385 = vpop.f32.mrf.mxu0
    %v1386 = vadd.f32 %v1297, %v1385
    %v1387 = vpop.f32.mrf.mxu0
    %v1388 = vadd.f32 %v1299, %v1387
    %1389 = vmatmul.bf16.gmra.mxu0 %v743
    %v1390 = vpop.f32.mrf.mxu0
    %v1391 = vadd.f32 %v1302, %v1390
    %v1392 = vpop.f32.mrf.mxu0
    %v1393 = vadd.f32 %v1304, %v1392
    %1394 = vmatmul.bf16.gmra.mxu0 %v750
    %v1395 = vpop.f32.mrf.mxu0
    %v1396 = vadd.f32 %v1307, %v1395
    %v1397 = vpop.f32.mrf.mxu0
    %v1398 = vadd.f32 %v1309, %v1397
    %1399 = vmatmul.bf16.gmra.mxu0 %v757
    %v1400 = vpop.f32.mrf.mxu0
    %v1401 = vadd.f32 %v1312, %v1400
    %v1402 = vpop.f32.mrf.mxu0
    %v1403 = vadd.f32 %v1314, %v1402
    %1404 = vmatmul.bf16.gmra.mxu0 %v764
    %v1405 = vpop.f32.mrf.mxu0
    %v1406 = vadd.f32 %v1317, %v1405
    %v1407 = vpop.f32.mrf.mxu0
    %v1408 = vadd.f32 %v1319, %v1407
    %1409 = vmatmul.bf16.gmra.mxu0 %v771
    %v1410 = vpop.f32.mrf.mxu0
    %v1411 = vadd.f32 %v1322, %v1410
    %v1412 = vpop.f32.mrf.mxu0
    %v1413 = vadd.f32 %v1324, %v1412
    %1414 = vmatmul.bf16.gmra.mxu0 %v778
    %v1415 = vpop.f32.mrf.mxu0
    %v1416 = vadd.f32 %v1327, %v1415
    %v1417 = vpop.f32.mrf.mxu0
    %v1418 = vadd.f32 %v1329, %v1417
    %1419 = vmatmul.bf16.gmra.mxu0 %v785
    %v1420 = vpop.f32.mrf.mxu0
    %v1421 = vadd.f32 %v1332, %v1420
    %v1422 = vpop.f32.mrf.mxu0
    %v1423 = vadd.f32 %v1334, %v1422
    %1424 = vmatmul.bf16.gmra.mxu0 %v792
    %v1425 = vpop.f32.mrf.mxu0
    %v1426 = vadd.f32 %v1337, %v1425
    %v1427 = vpop.f32.mrf.mxu0
    %v1428 = vadd.f32 %v1339, %v1427
    %1429 = vmatmul.bf16.gmra.mxu0 %v799
    %v1430 = vpop.f32.mrf.mxu0
    %v1431 = vadd.f32 %v1342, %v1430
    %v1432 = vpop.f32.mrf.mxu0
    %v1433 = vadd.f32 %v1344, %v1432
    %1434 = vmatmul.bf16.gmra.mxu0 %v806
    %v1435 = vpop.f32.mrf.mxu0
    %v1436 = vadd.f32 %v1347, %v1435
    %v1437 = vpop.f32.mrf.mxu0
    %v1438 = vadd.f32 %v1349, %v1437
    %1439 = vmatmul.bf16.gmra.mxu0 %v813
    %v1440 = vpop.f32.mrf.mxu0
    %v1441 = vadd.f32 %v1352, %v1440
    %v1442 = vpop.f32.mrf.mxu0
    %v1443 = vadd.f32 %v1354, %v1442
    %1444 = vdwg.mxu0
    %1445 = vmatpush.bf16.msra.mxu0 %v1178
    %1446 = vmatpush.bf16.msra.mxu0 %v1177
    %1447 = vmatpush.bf16.msra.mxu0 %v1176
    %1448 = vmatpush.bf16.msra.mxu0 %v1175
    %1449 = vmatpush.bf16.msra.mxu0 %v1174
    %1450 = vmatpush.bf16.msra.mxu0 %v1173
    %1451 = vmatpush.bf16.msra.mxu0 %v1172
    %1452 = vmatpush.bf16.msra.mxu0 %v1171
    %1453 = vmatmul.bf16.gmra.mxu0 %v709
    %v1454 = vpop.f32.mrf.mxu0
    %v1455 = vadd.f32 %v1366, %v1454
    %v1456 = vpop.f32.mrf.mxu0
    %v1457 = vadd.f32 %v1368, %v1456
    %1458 = vmatmul.bf16.gmra.mxu0 %v716
    %v1459 = vpop.f32.mrf.mxu0
    %v1460 = vadd.f32 %v1371, %v1459
    %v1461 = vpop.f32.mrf.mxu0
    %v1462 = vadd.f32 %v1373, %v1461
    %1463 = vmatmul.bf16.gmra.mxu0 %v723
    %v1464 = vpop.f32.mrf.mxu0
    %v1465 = vadd.f32 %v1376, %v1464
    %v1466 = vpop.f32.mrf.mxu0
    %v1467 = vadd.f32 %v1378, %v1466
    %1468 = vmatmul.bf16.gmra.mxu0 %v730
    %v1469 = vpop.f32.mrf.mxu0
    %v1470 = vadd.f32 %v1381, %v1469
    %v1471 = vpop.f32.mrf.mxu0
    %v1472 = vadd.f32 %v1383, %v1471
    %1473 = vmatmul.bf16.gmra.mxu0 %v737
    %v1474 = vpop.f32.mrf.mxu0
    %v1475 = vadd.f32 %v1386, %v1474
    %v1476 = vpop.f32.mrf.mxu0
    %v1477 = vadd.f32 %v1388, %v1476
    %1478 = vmatmul.bf16.gmra.mxu0 %v744
    %v1479 = vpop.f32.mrf.mxu0
    %v1480 = vadd.f32 %v1391, %v1479
    %v1481 = vpop.f32.mrf.mxu0
    %v1482 = vadd.f32 %v1393, %v1481
    %1483 = vmatmul.bf16.gmra.mxu0 %v751
    %v1484 = vpop.f32.mrf.mxu0
    %v1485 = vadd.f32 %v1396, %v1484
    %v1486 = vpop.f32.mrf.mxu0
    %v1487 = vadd.f32 %v1398, %v1486
    %1488 = vmatmul.bf16.gmra.mxu0 %v758
    %v1489 = vpop.f32.mrf.mxu0
    %v1490 = vadd.f32 %v1401, %v1489
    %v1491 = vpop.f32.mrf.mxu0
    %v1492 = vadd.f32 %v1403, %v1491
    %1493 = vmatmul.bf16.gmra.mxu0 %v765
    %v1494 = vpop.f32.mrf.mxu0
    %v1495 = vadd.f32 %v1406, %v1494
    %v1496 = vpop.f32.mrf.mxu0
    %v1497 = vadd.f32 %v1408, %v1496
    %1498 = vmatmul.bf16.gmra.mxu0 %v772
    %v1499 = vpop.f32.mrf.mxu0
    %v1500 = vadd.f32 %v1411, %v1499
    %v1501 = vpop.f32.mrf.mxu0
    %v1502 = vadd.f32 %v1413, %v1501
    %1503 = vmatmul.bf16.gmra.mxu0 %v779
    %v1504 = vpop.f32.mrf.mxu0
    %v1505 = vadd.f32 %v1416, %v1504
    %v1506 = vpop.f32.mrf.mxu0
    %v1507 = vadd.f32 %v1418, %v1506
    %1508 = vmatmul.bf16.gmra.mxu0 %v786
    %v1509 = vpop.f32.mrf.mxu0
    %v1510 = vadd.f32 %v1421, %v1509
    %v1511 = vpop.f32.mrf.mxu0
    %v1512 = vadd.f32 %v1423, %v1511
    %1513 = vmatmul.bf16.gmra.mxu0 %v793
    %v1514 = vpop.f32.mrf.mxu0
    %v1515 = vadd.f32 %v1426, %v1514
    %v1516 = vpop.f32.mrf.mxu0
    %v1517 = vadd.f32 %v1428, %v1516
    %1518 = vmatmul.bf16.gmra.mxu0 %v800
    %v1519 = vpop.f32.mrf.mxu0
    %v1520 = vadd.f32 %v1431, %v1519
    %v1521 = vpop.f32.mrf.mxu0
    %v1522 = vadd.f32 %v1433, %v1521
    %1523 = vmatmul.bf16.gmra.mxu0 %v807
    %v1524 = vpop.f32.mrf.mxu0
    %v1525 = vadd.f32 %v1436, %v1524
    %v1526 = vpop.f32.mrf.mxu0
    %v1527 = vadd.f32 %v1438, %v1526
    %1528 = vmatmul.bf16.gmra.mxu0 %v814
    %v1529 = vpop.f32.mrf.mxu0
    %v1530 = vadd.f32 %v1441, %v1529
    %v1531 = vpop.f32.mrf.mxu0
    %v1532 = vadd.f32 %v1443, %v1531
    %1533 = vdwg.mxu0
    %1534 = vmatpush.bf16.msra.mxu0 %v1186
    %1535 = vmatpush.bf16.msra.mxu0 %v1185
    %1536 = vmatpush.bf16.msra.mxu0 %v1184
    %1537 = vmatpush.bf16.msra.mxu0 %v1183
    %1538 = vmatpush.bf16.msra.mxu0 %v1182
    %1539 = vmatpush.bf16.msra.mxu0 %v1181
    %1540 = vmatpush.bf16.msra.mxu0 %v1180
    %1541 = vmatpush.bf16.msra.mxu0 %v1179
    %1542 = vmatmul.bf16.gmra.mxu0 %v710
    %v1543 = vpop.f32.mrf.mxu0
    %v1544 = vadd.f32 %v1455, %v1543
    %v1545 = vpop.f32.mrf.mxu0
    %v1546 = vadd.f32 %v1457, %v1545
    %1547 = vmatmul.bf16.gmra.mxu0 %v717
    %v1548 = vpop.f32.mrf.mxu0
    %v1549 = vadd.f32 %v1460, %v1548
    %v1550 = vpop.f32.mrf.mxu0
    %v1551 = vadd.f32 %v1462, %v1550
    %1552 = vmatmul.bf16.gmra.mxu0 %v724
    %v1553 = vpop.f32.mrf.mxu0
    %v1554 = vadd.f32 %v1465, %v1553
    %v1555 = vpop.f32.mrf.mxu0
    %v1556 = vadd.f32 %v1467, %v1555
    %1557 = vmatmul.bf16.gmra.mxu0 %v731
    %v1558 = vpop.f32.mrf.mxu0
    %v1559 = vadd.f32 %v1470, %v1558
    %v1560 = vpop.f32.mrf.mxu0
    %v1561 = vadd.f32 %v1472, %v1560
    %1562 = vmatmul.bf16.gmra.mxu0 %v738
    %v1563 = vpop.f32.mrf.mxu0
    %v1564 = vadd.f32 %v1475, %v1563
    %v1565 = vpop.f32.mrf.mxu0
    %v1566 = vadd.f32 %v1477, %v1565
    %1567 = vmatmul.bf16.gmra.mxu0 %v745
    %v1568 = vpop.f32.mrf.mxu0
    %v1569 = vadd.f32 %v1480, %v1568
    %v1570 = vpop.f32.mrf.mxu0
    %v1571 = vadd.f32 %v1482, %v1570
    %1572 = vmatmul.bf16.gmra.mxu0 %v752
    %v1573 = vpop.f32.mrf.mxu0
    %v1574 = vadd.f32 %v1485, %v1573
    %v1575 = vpop.f32.mrf.mxu0
    %v1576 = vadd.f32 %v1487, %v1575
    %1577 = vmatmul.bf16.gmra.mxu0 %v759
    %v1578 = vpop.f32.mrf.mxu0
    %v1579 = vadd.f32 %v1490, %v1578
    %v1580 = vpop.f32.mrf.mxu0
    %v1581 = vadd.f32 %v1492, %v1580
    %1582 = vmatmul.bf16.gmra.mxu0 %v766
    %v1583 = vpop.f32.mrf.mxu0
    %v1584 = vadd.f32 %v1495, %v1583
    %v1585 = vpop.f32.mrf.mxu0
    %v1586 = vadd.f32 %v1497, %v1585
    %1587 = vmatmul.bf16.gmra.mxu0 %v773
    %v1588 = vpop.f32.mrf.mxu0
    %v1589 = vadd.f32 %v1500, %v1588
    %v1590 = vpop.f32.mrf.mxu0
    %v1591 = vadd.f32 %v1502, %v1590
    %1592 = vmatmul.bf16.gmra.mxu0 %v780
    %v1593 = vpop.f32.mrf.mxu0
    %v1594 = vadd.f32 %v1505, %v1593
    %v1595 = vpop.f32.mrf.mxu0
    %v1596 = vadd.f32 %v1507, %v1595
    %1597 = vmatmul.bf16.gmra.mxu0 %v787
    %v1598 = vpop.f32.mrf.mxu0
    %v1599 = vadd.f32 %v1510, %v1598
    %v1600 = vpop.f32.mrf.mxu0
    %v1601 = vadd.f32 %v1512, %v1600
    %1602 = vmatmul.bf16.gmra.mxu0 %v794
    %v1603 = vpop.f32.mrf.mxu0
    %v1604 = vadd.f32 %v1515, %v1603
    %v1605 = vpop.f32.mrf.mxu0
    %v1606 = vadd.f32 %v1517, %v1605
    %1607 = vmatmul.bf16.gmra.mxu0 %v801
    %v1608 = vpop.f32.mrf.mxu0
    %v1609 = vadd.f32 %v1520, %v1608
    %v1610 = vpop.f32.mrf.mxu0
    %v1611 = vadd.f32 %v1522, %v1610
    %1612 = vmatmul.bf16.gmra.mxu0 %v808
    %v1613 = vpop.f32.mrf.mxu0
    %v1614 = vadd.f32 %v1525, %v1613
    %v1615 = vpop.f32.mrf.mxu0
    %v1616 = vadd.f32 %v1527, %v1615
    %1617 = vmatmul.bf16.gmra.mxu0 %v815
    %v1618 = vpop.f32.mrf.mxu0
    %v1619 = vadd.f32 %v1530, %v1618
    %v1620 = vpop.f32.mrf.mxu0
    %v1621 = vadd.f32 %v1532, %v1620
    %1622 = vdwg.mxu0
    %1623 = vmatpush.bf16.msra.mxu0 %v1194
    %1624 = vmatpush.bf16.msra.mxu0 %v1193
    %1625 = vmatpush.bf16.msra.mxu0 %v1192
    %1626 = vmatpush.bf16.msra.mxu0 %v1191
    %1627 = vmatpush.bf16.msra.mxu0 %v1190
    %1628 = vmatpush.bf16.msra.mxu0 %v1189
    %1629 = vmatpush.bf16.msra.mxu0 %v1188
    %1630 = vmatpush.bf16.msra.mxu0 %v1187
    %1631 = vmatmul.bf16.gmra.mxu0 %v711
    %v1632 = vpop.f32.mrf.mxu0
    %v1633 = vadd.f32 %v1544, %v1632
    %v1634 = vpop.f32.mrf.mxu0
    %v1635 = vadd.f32 %v1546, %v1634
    %1636 = vmatmul.bf16.gmra.mxu0 %v718
    %v1637 = vpop.f32.mrf.mxu0
    %v1638 = vadd.f32 %v1549, %v1637
    %v1639 = vpop.f32.mrf.mxu0
    %v1640 = vadd.f32 %v1551, %v1639
    %1641 = vmatmul.bf16.gmra.mxu0 %v725
    %v1642 = vpop.f32.mrf.mxu0
    %v1643 = vadd.f32 %v1554, %v1642
    %v1644 = vpop.f32.mrf.mxu0
    %v1645 = vadd.f32 %v1556, %v1644
    %1646 = vmatmul.bf16.gmra.mxu0 %v732
    %v1647 = vpop.f32.mrf.mxu0
    %v1648 = vadd.f32 %v1559, %v1647
    %v1649 = vpop.f32.mrf.mxu0
    %v1650 = vadd.f32 %v1561, %v1649
    %1651 = vmatmul.bf16.gmra.mxu0 %v739
    %v1652 = vpop.f32.mrf.mxu0
    %v1653 = vadd.f32 %v1564, %v1652
    %v1654 = vpop.f32.mrf.mxu0
    %v1655 = vadd.f32 %v1566, %v1654
    %1656 = vmatmul.bf16.gmra.mxu0 %v746
    %v1657 = vpop.f32.mrf.mxu0
    %v1658 = vadd.f32 %v1569, %v1657
    %v1659 = vpop.f32.mrf.mxu0
    %v1660 = vadd.f32 %v1571, %v1659
    %1661 = vmatmul.bf16.gmra.mxu0 %v753
    %v1662 = vpop.f32.mrf.mxu0
    %v1663 = vadd.f32 %v1574, %v1662
    %v1664 = vpop.f32.mrf.mxu0
    %v1665 = vadd.f32 %v1576, %v1664
    %1666 = vmatmul.bf16.gmra.mxu0 %v760
    %v1667 = vpop.f32.mrf.mxu0
    %v1668 = vadd.f32 %v1579, %v1667
    %v1669 = vpop.f32.mrf.mxu0
    %v1670 = vadd.f32 %v1581, %v1669
    %1671 = vmatmul.bf16.gmra.mxu0 %v767
    %v1672 = vpop.f32.mrf.mxu0
    %v1673 = vadd.f32 %v1584, %v1672
    %v1674 = vpop.f32.mrf.mxu0
    %v1675 = vadd.f32 %v1586, %v1674
    %1676 = vmatmul.bf16.gmra.mxu0 %v774
    %v1677 = vpop.f32.mrf.mxu0
    %v1678 = vadd.f32 %v1589, %v1677
    %v1679 = vpop.f32.mrf.mxu0
    %v1680 = vadd.f32 %v1591, %v1679
    %1681 = vmatmul.bf16.gmra.mxu0 %v781
    %v1682 = vpop.f32.mrf.mxu0
    %v1683 = vadd.f32 %v1594, %v1682
    %v1684 = vpop.f32.mrf.mxu0
    %v1685 = vadd.f32 %v1596, %v1684
    %1686 = vmatmul.bf16.gmra.mxu0 %v788
    %v1687 = vpop.f32.mrf.mxu0
    %v1688 = vadd.f32 %v1599, %v1687
    %v1689 = vpop.f32.mrf.mxu0
    %v1690 = vadd.f32 %v1601, %v1689
    %1691 = vmatmul.bf16.gmra.mxu0 %v795
    %v1692 = vpop.f32.mrf.mxu0
    %v1693 = vadd.f32 %v1604, %v1692
    %v1694 = vpop.f32.mrf.mxu0
    %v1695 = vadd.f32 %v1606, %v1694
    %1696 = vmatmul.bf16.gmra.mxu0 %v802
    %v1697 = vpop.f32.mrf.mxu0
    %v1698 = vadd.f32 %v1609, %v1697
    %v1699 = vpop.f32.mrf.mxu0
    %v1700 = vadd.f32 %v1611, %v1699
    %1701 = vmatmul.bf16.gmra.mxu0 %v809
    %v1702 = vpop.f32.mrf.mxu0
    %v1703 = vadd.f32 %v1614, %v1702
    %v1704 = vpop.f32.mrf.mxu0
    %v1705 = vadd.f32 %v1616, %v1704
    %1706 = vmatmul.bf16.gmra.mxu0 %v816
    %v1707 = vpop.f32.mrf.mxu0
    %v1708 = vadd.f32 %v1619, %v1707
    %v1709 = vpop.f32.mrf.mxu0
    %v1710 = vadd.f32 %v1621, %v1709
    %1711 = vdwg.mxu0
    %1712 = vmatpush.bf16.msra.mxu0 %v1202
    %1713 = vmatpush.bf16.msra.mxu0 %v1201
    %1714 = vmatpush.bf16.msra.mxu0 %v1200
    %1715 = vmatpush.bf16.msra.mxu0 %v1199
    %1716 = vmatpush.bf16.msra.mxu0 %v1198
    %1717 = vmatpush.bf16.msra.mxu0 %v1197
    %1718 = vmatpush.bf16.msra.mxu0 %v1196
    %1719 = vmatpush.bf16.msra.mxu0 %v1195
    %1720 = vmatmul.bf16.gmra.mxu0 %v712
    %v1721 = vpop.f32.mrf.mxu0
    %v1722 = vadd.f32 %v1633, %v1721
    %v1723 = vpop.f32.mrf.mxu0
    %v1724 = vadd.f32 %v1635, %v1723
    %1725 = vmatmul.bf16.gmra.mxu0 %v719
    %v1726 = vpop.f32.mrf.mxu0
    %v1727 = vadd.f32 %v1638, %v1726
    %v1728 = vpop.f32.mrf.mxu0
    %v1729 = vadd.f32 %v1640, %v1728
    %1730 = vmatmul.bf16.gmra.mxu0 %v726
    %v1731 = vpop.f32.mrf.mxu0
    %v1732 = vadd.f32 %v1643, %v1731
    %v1733 = vpop.f32.mrf.mxu0
    %v1734 = vadd.f32 %v1645, %v1733
    %1735 = vmatmul.bf16.gmra.mxu0 %v733
    %v1736 = vpop.f32.mrf.mxu0
    %v1737 = vadd.f32 %v1648, %v1736
    %v1738 = vpop.f32.mrf.mxu0
    %v1739 = vadd.f32 %v1650, %v1738
    %1740 = vmatmul.bf16.gmra.mxu0 %v740
    %v1741 = vpop.f32.mrf.mxu0
    %v1742 = vadd.f32 %v1653, %v1741
    %v1743 = vpop.f32.mrf.mxu0
    %v1744 = vadd.f32 %v1655, %v1743
    %1745 = vmatmul.bf16.gmra.mxu0 %v747
    %v1746 = vpop.f32.mrf.mxu0
    %v1747 = vadd.f32 %v1658, %v1746
    %v1748 = vpop.f32.mrf.mxu0
    %v1749 = vadd.f32 %v1660, %v1748
    %1750 = vmatmul.bf16.gmra.mxu0 %v754
    %v1751 = vpop.f32.mrf.mxu0
    %v1752 = vadd.f32 %v1663, %v1751
    %v1753 = vpop.f32.mrf.mxu0
    %v1754 = vadd.f32 %v1665, %v1753
    %1755 = vmatmul.bf16.gmra.mxu0 %v761
    %v1756 = vpop.f32.mrf.mxu0
    %v1757 = vadd.f32 %v1668, %v1756
    %v1758 = vpop.f32.mrf.mxu0
    %v1759 = vadd.f32 %v1670, %v1758
    %1760 = vmatmul.bf16.gmra.mxu0 %v768
    %v1761 = vpop.f32.mrf.mxu0
    %v1762 = vadd.f32 %v1673, %v1761
    %v1763 = vpop.f32.mrf.mxu0
    %v1764 = vadd.f32 %v1675, %v1763
    %1765 = vmatmul.bf16.gmra.mxu0 %v775
    %v1766 = vpop.f32.mrf.mxu0
    %v1767 = vadd.f32 %v1678, %v1766
    %v1768 = vpop.f32.mrf.mxu0
    %v1769 = vadd.f32 %v1680, %v1768
    %1770 = vmatmul.bf16.gmra.mxu0 %v782
    %v1771 = vpop.f32.mrf.mxu0
    %v1772 = vadd.f32 %v1683, %v1771
    %v1773 = vpop.f32.mrf.mxu0
    %v1774 = vadd.f32 %v1685, %v1773
    %1775 = vmatmul.bf16.gmra.mxu0 %v789
    %v1776 = vpop.f32.mrf.mxu0
    %v1777 = vadd.f32 %v1688, %v1776
    %v1778 = vpop.f32.mrf.mxu0
    %v1779 = vadd.f32 %v1690, %v1778
    %1780 = vmatmul.bf16.gmra.mxu0 %v796
    %v1781 = vpop.f32.mrf.mxu0
    %v1782 = vadd.f32 %v1693, %v1781
    %v1783 = vpop.f32.mrf.mxu0
    %v1784 = vadd.f32 %v1695, %v1783
    %1785 = vmatmul.bf16.gmra.mxu0 %v803
    %v1786 = vpop.f32.mrf.mxu0
    %v1787 = vadd.f32 %v1698, %v1786
    %v1788 = vpop.f32.mrf.mxu0
    %v1789 = vadd.f32 %v1700, %v1788
    %1790 = vmatmul.bf16.gmra.mxu0 %v810
    %v1791 = vpop.f32.mrf.mxu0
    %v1792 = vadd.f32 %v1703, %v1791
    %v1793 = vpop.f32.mrf.mxu0
    %v1794 = vadd.f32 %v1705, %v1793
    %1795 = vmatmul.bf16.gmra.mxu0 %v817
    %v1796 = vpop.f32.mrf.mxu0
    %v1797 = vadd.f32 %v1708, %v1796
    %v1798 = vpop.f32.mrf.mxu0
    %v1799 = vadd.f32 %v1710, %v1798
    %1800 = vdwg.mxu0
    %1801 = vmatpush.bf16.msra.mxu0 %v1210
    %1802 = vmatpush.bf16.msra.mxu0 %v1209
    %1803 = vmatpush.bf16.msra.mxu0 %v1208
    %1804 = vmatpush.bf16.msra.mxu0 %v1207
    %1805 = vmatpush.bf16.msra.mxu0 %v1206
    %1806 = vmatpush.bf16.msra.mxu0 %v1205
    %1807 = vmatpush.bf16.msra.mxu0 %v1204
    %1808 = vmatpush.bf16.msra.mxu0 %v1203
    %1809 = vmatmul.bf16.gmra.mxu0 %v713
    %v1810 = vpop.f32.mrf.mxu0
    %v1811 = vadd.f32 %v1722, %v1810
    %v1812 = vpop.f32.mrf.mxu0
    %v1813 = vadd.f32 %v1724, %v1812
    %1814 = vmatmul.bf16.gmra.mxu0 %v720
    %v1815 = vpop.f32.mrf.mxu0
    %v1816 = vadd.f32 %v1727, %v1815
    %v1817 = vpop.f32.mrf.mxu0
    %v1818 = vadd.f32 %v1729, %v1817
    %1819 = vmatmul.bf16.gmra.mxu0 %v727
    %v1820 = vpop.f32.mrf.mxu0
    %v1821 = vadd.f32 %v1732, %v1820
    %v1822 = vpop.f32.mrf.mxu0
    %v1823 = vadd.f32 %v1734, %v1822
    %1824 = vmatmul.bf16.gmra.mxu0 %v734
    %v1825 = vpop.f32.mrf.mxu0
    %v1826 = vadd.f32 %v1737, %v1825
    %v1827 = vpop.f32.mrf.mxu0
    %v1828 = vadd.f32 %v1739, %v1827
    %1829 = vmatmul.bf16.gmra.mxu0 %v741
    %v1830 = vpop.f32.mrf.mxu0
    %v1831 = vadd.f32 %v1742, %v1830
    %v1832 = vpop.f32.mrf.mxu0
    %v1833 = vadd.f32 %v1744, %v1832
    %1834 = vmatmul.bf16.gmra.mxu0 %v748
    %v1835 = vpop.f32.mrf.mxu0
    %v1836 = vadd.f32 %v1747, %v1835
    %v1837 = vpop.f32.mrf.mxu0
    %v1838 = vadd.f32 %v1749, %v1837
    %1839 = vmatmul.bf16.gmra.mxu0 %v755
    %v1840 = vpop.f32.mrf.mxu0
    %v1841 = vadd.f32 %v1752, %v1840
    %v1842 = vpop.f32.mrf.mxu0
    %v1843 = vadd.f32 %v1754, %v1842
    %1844 = vmatmul.bf16.gmra.mxu0 %v762
    %v1845 = vpop.f32.mrf.mxu0
    %v1846 = vadd.f32 %v1757, %v1845
    %v1847 = vpop.f32.mrf.mxu0
    %v1848 = vadd.f32 %v1759, %v1847
    %1849 = vmatmul.bf16.gmra.mxu0 %v769
    %v1850 = vpop.f32.mrf.mxu0
    %v1851 = vadd.f32 %v1762, %v1850
    %v1852 = vpop.f32.mrf.mxu0
    %v1853 = vadd.f32 %v1764, %v1852
    %1854 = vmatmul.bf16.gmra.mxu0 %v776
    %v1855 = vpop.f32.mrf.mxu0
    %v1856 = vadd.f32 %v1767, %v1855
    %v1857 = vpop.f32.mrf.mxu0
    %v1858 = vadd.f32 %v1769, %v1857
    %1859 = vmatmul.bf16.gmra.mxu0 %v783
    %v1860 = vpop.f32.mrf.mxu0
    %v1861 = vadd.f32 %v1772, %v1860
    %v1862 = vpop.f32.mrf.mxu0
    %v1863 = vadd.f32 %v1774, %v1862
    %1864 = vmatmul.bf16.gmra.mxu0 %v790
    %v1865 = vpop.f32.mrf.mxu0
    %v1866 = vadd.f32 %v1777, %v1865
    %v1867 = vpop.f32.mrf.mxu0
    %v1868 = vadd.f32 %v1779, %v1867
    %1869 = vmatmul.bf16.gmra.mxu0 %v797
    %v1870 = vpop.f32.mrf.mxu0
    %v1871 = vadd.f32 %v1782, %v1870
    %v1872 = vpop.f32.mrf.mxu0
    %v1873 = vadd.f32 %v1784, %v1872
    %1874 = vmatmul.bf16.gmra.mxu0 %v804
    %v1875 = vpop.f32.mrf.mxu0
    %v1876 = vadd.f32 %v1787, %v1875
    %v1877 = vpop.f32.mrf.mxu0
    %v1878 = vadd.f32 %v1789, %v1877
    %1879 = vmatmul.bf16.gmra.mxu0 %v811
    %v1880 = vpop.f32.mrf.mxu0
    %v1881 = vadd.f32 %v1792, %v1880
    %v1882 = vpop.f32.mrf.mxu0
    %v1883 = vadd.f32 %v1794, %v1882
    %1884 = vmatmul.bf16.gmra.mxu0 %v818
    %v1885 = vpop.f32.mrf.mxu0
    %v1886 = vadd.f32 %v1797, %v1885
    %v1887 = vpop.f32.mrf.mxu0
    %v1888 = vadd.f32 %v1799, %v1887
    %1889 = vdwg.mxu0
    %v1890 = vmax.f32 %v1811, 0.0
    %v1891 = vmax.f32 %v1813, 0.0
    %v1892 = vmax.f32 %v1816, 0.0
    %v1893 = vmax.f32 %v1818, 0.0
    %v1894 = vmax.f32 %v1821, 0.0
    %v1895 = vmax.f32 %v1823, 0.0
    %v1896 = vmax.f32 %v1826, 0.0
    %v1897 = vmax.f32 %v1828, 0.0
    %v1898 = vmax.f32 %v1831, 0.0
    %v1899 = vmax.f32 %v1833, 0.0
    %v1900 = vmax.f32 %v1836, 0.0
    %v1901 = vmax.f32 %v1838, 0.0
    %v1902 = vmax.f32 %v1841, 0.0
    %v1903 = vmax.f32 %v1843, 0.0
    %v1904 = vmax.f32 %v1846, 0.0
    %v1905 = vmax.f32 %v1848, 0.0
    %v1906 = vmax.f32 %v1851, 0.0
    %v1907 = vmax.f32 %v1853, 0.0
    %v1908 = vmax.f32 %v1856, 0.0
    %v1909 = vmax.f32 %v1858, 0.0
    %v1910 = vmax.f32 %v1861, 0.0
    %v1911 = vmax.f32 %v1863, 0.0
    %v1912 = vmax.f32 %v1866, 0.0
    %v1913 = vmax.f32 %v1868, 0.0
    %v1914 = vmax.f32 %v1871, 0.0
    %v1915 = vmax.f32 %v1873, 0.0
    %v1916 = vmax.f32 %v1876, 0.0
    %v1917 = vmax.f32 %v1878, 0.0
    %v1918 = vmax.f32 %v1881, 0.0
    %v1919 = vmax.f32 %v1883, 0.0
    %v1920 = vmax.f32 %v1886, 0.0
    %v1921 = vmax.f32 %v1888, 0.0
    %v1922 = vpack.c.bf16 %v1891, %v1890
    %v1923 = vpack.c.bf16 %v1893, %v1892
    %v1924 = vpack.c.bf16 %v1895, %v1894
    %v1925 = vpack.c.bf16 %v1897, %v1896
    %v1926 = vpack.c.bf16 %v1899, %v1898
    %v1927 = vpack.c.bf16 %v1901, %v1900
    %v1928 = vpack.c.bf16 %v1903, %v1902
    %v1929 = vpack.c.bf16 %v1905, %v1904
    %v1930 = vpack.c.bf16 %v1907, %v1906
    %v1931 = vpack.c.bf16 %v1909, %v1908
    %v1932 = vpack.c.bf16 %v1911, %v1910
    %v1933 = vpack.c.bf16 %v1913, %v1912
    %v1934 = vpack.c.bf16 %v1915, %v1914
    %v1935 = vpack.c.bf16 %v1917, %v1916
    %v1936 = vpack.c.bf16 %v1919, %v1918
    %v1937 = vpack.c.bf16 %v1921, %v1920
    %v1938 = vld [vmem:[#allocation7] sm:$0xf]
    %v1939 = vld [vmem:[#allocation7 + $0x4] sm:$0xf]
    %v1940 = vld [vmem:[#allocation7 + $0x8] sm:$0xf]
    %v1941 = vld [vmem:[#allocation7 + $0xc] sm:$0xf]
    %v1942 = vld [vmem:[#allocation7 + $0x10] sm:$0xf]
    %v1943 = vld [vmem:[#allocation7 + $0x14] sm:$0xf]
    %v1944 = vld [vmem:[#allocation7 + $0x18] sm:$0xf]
    %v1945 = vld [vmem:[#allocation7 + $0x1c] sm:$0xf]
    %v1946 = vld [vmem:[#allocation7 + $0x20] sm:$0xf]
    %v1947 = vld [vmem:[#allocation7 + $0x24] sm:$0xf]
    %v1948 = vld [vmem:[#allocation7 + $0x28] sm:$0xf]
    %v1949 = vld [vmem:[#allocation7 + $0x2c] sm:$0xf]
    %v1950 = vld [vmem:[#allocation7 + $0x30] sm:$0xf]
    %v1951 = vld [vmem:[#allocation7 + $0x34] sm:$0xf]
    %v1952 = vld [vmem:[#allocation7 + $0x38] sm:$0xf]
    %v1953 = vld [vmem:[#allocation7 + $0x3c] sm:$0xf]
    %v1954 = vld [vmem:[%s4] sm:$0x1]
    %v1956 = vperm.slane %v1954, 0
    %v1974 = vunpack.c.l.b16 %v1938
    %v1975 = vunpack.c.l.b16 %v1939
    %v1976 = vunpack.c.l.b16 %v1940
    %v1977 = vunpack.c.l.b16 %v1941
    %v1978 = vunpack.c.l.b16 %v1942
    %v1979 = vunpack.c.l.b16 %v1943
    %v1980 = vunpack.c.l.b16 %v1944
    %v1981 = vunpack.c.l.b16 %v1945
    %v1982 = vunpack.c.l.b16 %v1946
    %v1983 = vunpack.c.l.b16 %v1947
    %v1984 = vunpack.c.l.b16 %v1948
    %v1985 = vunpack.c.l.b16 %v1949
    %v1986 = vunpack.c.l.b16 %v1950
    %v1987 = vunpack.c.l.b16 %v1951
    %v1988 = vunpack.c.l.b16 %v1952
    %v1989 = vunpack.c.l.b16 %v1953
    %v1990 = vpack.c.b16 %v1975, %v1974
    %v1991 = vpack.c.b16 %v1977, %v1976
    %v1992 = vpack.c.b16 %v1979, %v1978
    %v1993 = vpack.c.b16 %v1981, %v1980
    %v1994 = vpack.c.b16 %v1983, %v1982
    %v1995 = vpack.c.b16 %v1985, %v1984
    %v1996 = vpack.c.b16 %v1987, %v1986
    %v1997 = vpack.c.b16 %v1989, %v1988
    %2006 = vmatpush.bf16.msra.mxu0 %v1997
    %2007 = vmatpush.bf16.msra.mxu0 %v1996
    %2008 = vmatpush.bf16.msra.mxu0 %v1995
    %2009 = vmatpush.bf16.msra.mxu0 %v1994
    %2010 = vmatpush.bf16.msra.mxu0 %v1993
    %2011 = vmatpush.bf16.msra.mxu0 %v1992
    %2012 = vmatpush.bf16.msra.mxu0 %v1991
    %2013 = vmatpush.bf16.msra.mxu0 %v1990
    %2014 = vmatmul.bf16.gmra.mxu0 %v1922
    %v2015 = vpop.f32.mrf.mxu0
    %v2016 = vadd.f32 %v1956, %v2015
    %v2017 = vpop.f32.mrf.mxu0
    %v2018 = vadd.f32 %v1956, %v2017
    %2019 = vmatmul.bf16.gmra.mxu0 %v1923
    %v2020 = vpop.f32.mrf.mxu0
    %v2021 = vadd.f32 %v1956, %v2020
    %v2022 = vpop.f32.mrf.mxu0
    %v2023 = vadd.f32 %v1956, %v2022
    %2024 = vmatmul.bf16.gmra.mxu0 %v1924
    %v2025 = vpop.f32.mrf.mxu0
    %v2026 = vadd.f32 %v1956, %v2025
    %v2027 = vpop.f32.mrf.mxu0
    %v2028 = vadd.f32 %v1956, %v2027
    %2029 = vmatmul.bf16.gmra.mxu0 %v1925
    %v2030 = vpop.f32.mrf.mxu0
    %v2031 = vadd.f32 %v1956, %v2030
    %v2032 = vpop.f32.mrf.mxu0
    %v2033 = vadd.f32 %v1956, %v2032
    %2034 = vmatmul.bf16.gmra.mxu0 %v1926
    %v2035 = vpop.f32.mrf.mxu0
    %v2036 = vadd.f32 %v1956, %v2035
    %v2037 = vpop.f32.mrf.mxu0
    %v2038 = vadd.f32 %v1956, %v2037
    %2039 = vmatmul.bf16.gmra.mxu0 %v1927
    %v2040 = vpop.f32.mrf.mxu0
    %v2041 = vadd.f32 %v1956, %v2040
    %v2042 = vpop.f32.mrf.mxu0
    %v2043 = vadd.f32 %v1956, %v2042
    %2044 = vmatmul.bf16.gmra.mxu0 %v1928
    %v2045 = vpop.f32.mrf.mxu0
    %v2046 = vadd.f32 %v1956, %v2045
    %v2047 = vpop.f32.mrf.mxu0
    %v2048 = vadd.f32 %v1956, %v2047
    %2049 = vmatmul.bf16.gmra.mxu0 %v1929
    %v2050 = vpop.f32.mrf.mxu0
    %v2051 = vadd.f32 %v1956, %v2050
    %v2052 = vpop.f32.mrf.mxu0
    %v2053 = vadd.f32 %v1956, %v2052
    %2054 = vmatmul.bf16.gmra.mxu0 %v1930
    %v2055 = vpop.f32.mrf.mxu0
    %v2056 = vadd.f32 %v1956, %v2055
    %v2057 = vpop.f32.mrf.mxu0
    %v2058 = vadd.f32 %v1956, %v2057
    %2059 = vmatmul.bf16.gmra.mxu0 %v1931
    %v2060 = vpop.f32.mrf.mxu0
    %v2061 = vadd.f32 %v1956, %v2060
    %v2062 = vpop.f32.mrf.mxu0
    %v2063 = vadd.f32 %v1956, %v2062
    %2064 = vmatmul.bf16.gmra.mxu0 %v1932
    %v2065 = vpop.f32.mrf.mxu0
    %v2066 = vadd.f32 %v1956, %v2065
    %v2067 = vpop.f32.mrf.mxu0
    %v2068 = vadd.f32 %v1956, %v2067
    %2069 = vmatmul.bf16.gmra.mxu0 %v1933
    %v2070 = vpop.f32.mrf.mxu0
    %v2071 = vadd.f32 %v1956, %v2070
    %v2072 = vpop.f32.mrf.mxu0
    %v2073 = vadd.f32 %v1956, %v2072
    %2074 = vmatmul.bf16.gmra.mxu0 %v1934
    %v2075 = vpop.f32.mrf.mxu0
    %v2076 = vadd.f32 %v1956, %v2075
    %v2077 = vpop.f32.mrf.mxu0
    %v2078 = vadd.f32 %v1956, %v2077
    %2079 = vmatmul.bf16.gmra.mxu0 %v1935
    %v2080 = vpop.f32.mrf.mxu0
    %v2081 = vadd.f32 %v1956, %v2080
    %v2082 = vpop.f32.mrf.mxu0
    %v2083 = vadd.f32 %v1956, %v2082
    %2084 = vmatmul.bf16.gmra.mxu0 %v1936
    %v2085 = vpop.f32.mrf.mxu0
    %v2086 = vadd.f32 %v1956, %v2085
    %v2087 = vpop.f32.mrf.mxu0
    %v2088 = vadd.f32 %v1956, %v2087
    %2089 = vmatmul.bf16.gmra.mxu0 %v1937
    %v2090 = vpop.f32.mrf.mxu0
    %v2091 = vadd.f32 %v1956, %v2090
    %v2092 = vpop.f32.mrf.mxu0
    %v2093 = vadd.f32 %v1956, %v2092
    %2094 = vdwg.mxu0
    %v2095 = vmax.f32 %v2016, 0.0
    %v2096 = vmax.f32 %v2018, 0.0
    %v2097 = vmax.f32 %v2021, 0.0
    %v2098 = vmax.f32 %v2023, 0.0
    %v2099 = vmax.f32 %v2026, 0.0
    %v2100 = vmax.f32 %v2028, 0.0
    %v2101 = vmax.f32 %v2031, 0.0
    %v2102 = vmax.f32 %v2033, 0.0
    %v2103 = vmax.f32 %v2036, 0.0
    %v2104 = vmax.f32 %v2038, 0.0
    %v2105 = vmax.f32 %v2041, 0.0
    %v2106 = vmax.f32 %v2043, 0.0
    %v2107 = vmax.f32 %v2046, 0.0
    %v2108 = vmax.f32 %v2048, 0.0
    %v2109 = vmax.f32 %v2051, 0.0
    %v2110 = vmax.f32 %v2053, 0.0
    %v2111 = vmax.f32 %v2056, 0.0
    %v2112 = vmax.f32 %v2058, 0.0
    %v2113 = vmax.f32 %v2061, 0.0
    %v2114 = vmax.f32 %v2063, 0.0
    %v2115 = vmax.f32 %v2066, 0.0
    %v2116 = vmax.f32 %v2068, 0.0
    %v2117 = vmax.f32 %v2071, 0.0
    %v2118 = vmax.f32 %v2073, 0.0
    %v2119 = vmax.f32 %v2076, 0.0
    %v2120 = vmax.f32 %v2078, 0.0
    %v2121 = vmax.f32 %v2081, 0.0
    %v2122 = vmax.f32 %v2083, 0.0
    %v2123 = vmax.f32 %v2086, 0.0
    %v2124 = vmax.f32 %v2088, 0.0
    %v2125 = vmax.f32 %v2091, 0.0
    %v2126 = vmax.f32 %v2093, 0.0
    %v2127 = vpack.c.bf16 %v2096, %v2095
    %v2128 = vpack.c.bf16 %v2098, %v2097
    %v2129 = vpack.c.bf16 %v2100, %v2099
    %v2130 = vpack.c.bf16 %v2102, %v2101
    %v2131 = vpack.c.bf16 %v2104, %v2103
    %v2132 = vpack.c.bf16 %v2106, %v2105
    %v2133 = vpack.c.bf16 %v2108, %v2107
    %v2134 = vpack.c.bf16 %v2110, %v2109
    %v2135 = vpack.c.bf16 %v2112, %v2111
    %v2136 = vpack.c.bf16 %v2114, %v2113
    %v2137 = vpack.c.bf16 %v2116, %v2115
    %v2138 = vpack.c.bf16 %v2118, %v2117
    %v2139 = vpack.c.bf16 %v2120, %v2119
    %v2140 = vpack.c.bf16 %v2122, %v2121
    %v2141 = vpack.c.bf16 %v2124, %v2123
    %v2142 = vpack.c.bf16 %v2126, %v2125
    %v2143 = vld [vmem:[#allocation8] sm:$0xf]
    %v2144 = vld [vmem:[#allocation8 + $0x4] sm:$0xf]
    %v2145 = vld [vmem:[#allocation8 + $0x8] sm:$0xf]
    %v2146 = vld [vmem:[#allocation8 + $0xc] sm:$0xf]
    %v2147 = vld [vmem:[#allocation8 + $0x10] sm:$0xf]
    %v2148 = vld [vmem:[#allocation8 + $0x14] sm:$0xf]
    %v2149 = vld [vmem:[#allocation8 + $0x18] sm:$0xf]
    %v2150 = vld [vmem:[#allocation8 + $0x1c] sm:$0xf]
    %v2151 = vld [vmem:[#allocation8 + $0x20] sm:$0xf]
    %v2152 = vld [vmem:[#allocation8 + $0x24] sm:$0xf]
    %v2153 = vld [vmem:[#allocation8 + $0x28] sm:$0xf]
    %v2154 = vld [vmem:[#allocation8 + $0x2c] sm:$0xf]
    %v2155 = vld [vmem:[#allocation8 + $0x30] sm:$0xf]
    %v2156 = vld [vmem:[#allocation8 + $0x34] sm:$0xf]
    %v2157 = vld [vmem:[#allocation8 + $0x38] sm:$0xf]
    %v2158 = vld [vmem:[#allocation8 + $0x3c] sm:$0xf]
    %v2159 = vld [vmem:[%s6] sm:$0x1]
    %v2161 = vperm.slane %v2159, 0
    %v2179 = vunpack.c.l.b16 %v2143
    %v2180 = vunpack.c.l.b16 %v2144
    %v2181 = vunpack.c.l.b16 %v2145
    %v2182 = vunpack.c.l.b16 %v2146
    %v2183 = vunpack.c.l.b16 %v2147
    %v2184 = vunpack.c.l.b16 %v2148
    %v2185 = vunpack.c.l.b16 %v2149
    %v2186 = vunpack.c.l.b16 %v2150
    %v2187 = vunpack.c.l.b16 %v2151
    %v2188 = vunpack.c.l.b16 %v2152
    %v2189 = vunpack.c.l.b16 %v2153
    %v2190 = vunpack.c.l.b16 %v2154
    %v2191 = vunpack.c.l.b16 %v2155
    %v2192 = vunpack.c.l.b16 %v2156
    %v2193 = vunpack.c.l.b16 %v2157
    %v2194 = vunpack.c.l.b16 %v2158
    %v2195 = vpack.c.b16 %v2180, %v2179
    %v2196 = vpack.c.b16 %v2182, %v2181
    %v2197 = vpack.c.b16 %v2184, %v2183
    %v2198 = vpack.c.b16 %v2186, %v2185
    %v2199 = vpack.c.b16 %v2188, %v2187
    %v2200 = vpack.c.b16 %v2190, %v2189
    %v2201 = vpack.c.b16 %v2192, %v2191
    %v2202 = vpack.c.b16 %v2194, %v2193
    %2211 = vmatpush.bf16.msra.mxu0 %v2202
    %2212 = vmatpush.bf16.msra.mxu0 %v2201
    %2213 = vmatpush.bf16.msra.mxu0 %v2200
    %2214 = vmatpush.bf16.msra.mxu0 %v2199
    %2215 = vmatpush.bf16.msra.mxu0 %v2198
    %2216 = vmatpush.bf16.msra.mxu0 %v2197
    %2217 = vmatpush.bf16.msra.mxu0 %v2196
    %2218 = vmatpush.bf16.msra.mxu0 %v2195
    %2219 = vmatmul.bf16.gmra.mxu0 %v2127
    %v2220 = vpop.f32.mrf.mxu0
    %v2221 = vadd.f32 %v2161, %v2220
    %v2222 = vpop.f32.mrf.mxu0
    %v2223 = vadd.f32 %v2161, %v2222
    %2224 = vmatmul.bf16.gmra.mxu0 %v2128
    %v2225 = vpop.f32.mrf.mxu0
    %v2226 = vadd.f32 %v2161, %v2225
    %v2227 = vpop.f32.mrf.mxu0
    %v2228 = vadd.f32 %v2161, %v2227
    %2229 = vmatmul.bf16.gmra.mxu0 %v2129
    %v2230 = vpop.f32.mrf.mxu0
    %v2231 = vadd.f32 %v2161, %v2230
    %v2232 = vpop.f32.mrf.mxu0
    %v2233 = vadd.f32 %v2161, %v2232
    %2234 = vmatmul.bf16.gmra.mxu0 %v2130
    %v2235 = vpop.f32.mrf.mxu0
    %v2236 = vadd.f32 %v2161, %v2235
    %v2237 = vpop.f32.mrf.mxu0
    %v2238 = vadd.f32 %v2161, %v2237
    %2239 = vmatmul.bf16.gmra.mxu0 %v2131
    %v2240 = vpop.f32.mrf.mxu0
    %v2241 = vadd.f32 %v2161, %v2240
    %v2242 = vpop.f32.mrf.mxu0
    %v2243 = vadd.f32 %v2161, %v2242
    %2244 = vmatmul.bf16.gmra.mxu0 %v2132
    %v2245 = vpop.f32.mrf.mxu0
    %v2246 = vadd.f32 %v2161, %v2245
    %v2247 = vpop.f32.mrf.mxu0
    %v2248 = vadd.f32 %v2161, %v2247
    %2249 = vmatmul.bf16.gmra.mxu0 %v2133
    %v2250 = vpop.f32.mrf.mxu0
    %v2251 = vadd.f32 %v2161, %v2250
    %v2252 = vpop.f32.mrf.mxu0
    %v2253 = vadd.f32 %v2161, %v2252
    %2254 = vmatmul.bf16.gmra.mxu0 %v2134
    %v2255 = vpop.f32.mrf.mxu0
    %v2256 = vadd.f32 %v2161, %v2255
    %v2257 = vpop.f32.mrf.mxu0
    %v2258 = vadd.f32 %v2161, %v2257
    %2259 = vmatmul.bf16.gmra.mxu0 %v2135
    %v2260 = vpop.f32.mrf.mxu0
    %v2261 = vadd.f32 %v2161, %v2260
    %v2262 = vpop.f32.mrf.mxu0
    %v2263 = vadd.f32 %v2161, %v2262
    %2264 = vmatmul.bf16.gmra.mxu0 %v2136
    %v2265 = vpop.f32.mrf.mxu0
    %v2266 = vadd.f32 %v2161, %v2265
    %v2267 = vpop.f32.mrf.mxu0
    %v2268 = vadd.f32 %v2161, %v2267
    %2269 = vmatmul.bf16.gmra.mxu0 %v2137
    %v2270 = vpop.f32.mrf.mxu0
    %v2271 = vadd.f32 %v2161, %v2270
    %v2272 = vpop.f32.mrf.mxu0
    %v2273 = vadd.f32 %v2161, %v2272
    %2274 = vmatmul.bf16.gmra.mxu0 %v2138
    %v2275 = vpop.f32.mrf.mxu0
    %v2276 = vadd.f32 %v2161, %v2275
    %v2277 = vpop.f32.mrf.mxu0
    %v2278 = vadd.f32 %v2161, %v2277
    %2279 = vmatmul.bf16.gmra.mxu0 %v2139
    %v2280 = vpop.f32.mrf.mxu0
    %v2281 = vadd.f32 %v2161, %v2280
    %v2282 = vpop.f32.mrf.mxu0
    %v2283 = vadd.f32 %v2161, %v2282
    %2284 = vmatmul.bf16.gmra.mxu0 %v2140
    %v2285 = vpop.f32.mrf.mxu0
    %v2286 = vadd.f32 %v2161, %v2285
    %v2287 = vpop.f32.mrf.mxu0
    %v2288 = vadd.f32 %v2161, %v2287
    %2289 = vmatmul.bf16.gmra.mxu0 %v2141
    %v2290 = vpop.f32.mrf.mxu0
    %v2291 = vadd.f32 %v2161, %v2290
    %v2292 = vpop.f32.mrf.mxu0
    %v2293 = vadd.f32 %v2161, %v2292
    %2294 = vmatmul.bf16.gmra.mxu0 %v2142
    %v2295 = vpop.f32.mrf.mxu0
    %v2296 = vadd.f32 %v2161, %v2295
    %v2297 = vpop.f32.mrf.mxu0
    %v2298 = vadd.f32 %v2161, %v2297
    %2299 = vdwg.mxu0
    %v2300 = vmax.f32 %v2221, 0.0
    %v2301 = vmax.f32 %v2223, 0.0
    %v2302 = vmax.f32 %v2226, 0.0
    %v2303 = vmax.f32 %v2228, 0.0
    %v2304 = vmax.f32 %v2231, 0.0
    %v2305 = vmax.f32 %v2233, 0.0
    %v2306 = vmax.f32 %v2236, 0.0
    %v2307 = vmax.f32 %v2238, 0.0
    %v2308 = vmax.f32 %v2241, 0.0
    %v2309 = vmax.f32 %v2243, 0.0
    %v2310 = vmax.f32 %v2246, 0.0
    %v2311 = vmax.f32 %v2248, 0.0
    %v2312 = vmax.f32 %v2251, 0.0
    %v2313 = vmax.f32 %v2253, 0.0
    %v2314 = vmax.f32 %v2256, 0.0
    %v2315 = vmax.f32 %v2258, 0.0
    %v2316 = vmax.f32 %v2261, 0.0
    %v2317 = vmax.f32 %v2263, 0.0
    %v2318 = vmax.f32 %v2266, 0.0
    %v2319 = vmax.f32 %v2268, 0.0
    %v2320 = vmax.f32 %v2271, 0.0
    %v2321 = vmax.f32 %v2273, 0.0
    %v2322 = vmax.f32 %v2276, 0.0
    %v2323 = vmax.f32 %v2278, 0.0
    %v2324 = vmax.f32 %v2281, 0.0
    %v2325 = vmax.f32 %v2283, 0.0
    %v2326 = vmax.f32 %v2286, 0.0
    %v2327 = vmax.f32 %v2288, 0.0
    %v2328 = vmax.f32 %v2291, 0.0
    %v2329 = vmax.f32 %v2293, 0.0
    %v2330 = vmax.f32 %v2296, 0.0
    %v2331 = vmax.f32 %v2298, 0.0
    %v2332 = vpack.c.bf16 %v2301, %v2300
    %v2333 = vpack.c.bf16 %v2303, %v2302
    %v2334 = vpack.c.bf16 %v2305, %v2304
    %v2335 = vpack.c.bf16 %v2307, %v2306
    %v2336 = vpack.c.bf16 %v2309, %v2308
    %v2337 = vpack.c.bf16 %v2311, %v2310
    %v2338 = vpack.c.bf16 %v2313, %v2312
    %v2339 = vpack.c.bf16 %v2315, %v2314
    %v2340 = vpack.c.bf16 %v2317, %v2316
    %v2341 = vpack.c.bf16 %v2319, %v2318
    %v2342 = vpack.c.bf16 %v2321, %v2320
    %v2343 = vpack.c.bf16 %v2323, %v2322
    %v2344 = vpack.c.bf16 %v2325, %v2324
    %v2345 = vpack.c.bf16 %v2327, %v2326
    %v2346 = vpack.c.bf16 %v2329, %v2328
    %v2347 = vpack.c.bf16 %v2331, %v2330
    %v2348 = vld [vmem:[#allocation10] sm:$0xf]
    %v2349 = vld [vmem:[#allocation10 + $0x4] sm:$0xf]
    %v2350 = vld [vmem:[#allocation10 + $0x8] sm:$0xf]
    %v2351 = vld [vmem:[#allocation10 + $0xc] sm:$0xf]
    %v2352 = vld [vmem:[#allocation10 + $0x10] sm:$0xf]
    %v2353 = vld [vmem:[#allocation10 + $0x14] sm:$0xf]
    %v2354 = vld [vmem:[#allocation10 + $0x18] sm:$0xf]
    %v2355 = vld [vmem:[#allocation10 + $0x1c] sm:$0xf]
    %v2356 = vld [vmem:[#allocation10 + $0x20] sm:$0xf]
    %v2357 = vld [vmem:[#allocation10 + $0x24] sm:$0xf]
    %v2358 = vld [vmem:[#allocation10 + $0x28] sm:$0xf]
    %v2359 = vld [vmem:[#allocation10 + $0x2c] sm:$0xf]
    %v2360 = vld [vmem:[#allocation10 + $0x30] sm:$0xf]
    %v2361 = vld [vmem:[#allocation10 + $0x34] sm:$0xf]
    %v2362 = vld [vmem:[#allocation10 + $0x38] sm:$0xf]
    %v2363 = vld [vmem:[#allocation10 + $0x3c] sm:$0xf]
    %v2364 = vld [vmem:[%s8] sm:$0x1]
    %v2366 = vperm.slane %v2364, 0
    %v2384 = vunpack.c.l.b16 %v2348
    %v2385 = vunpack.c.l.b16 %v2349
    %v2386 = vunpack.c.l.b16 %v2350
    %v2387 = vunpack.c.l.b16 %v2351
    %v2388 = vunpack.c.l.b16 %v2352
    %v2389 = vunpack.c.l.b16 %v2353
    %v2390 = vunpack.c.l.b16 %v2354
    %v2391 = vunpack.c.l.b16 %v2355
    %v2392 = vunpack.c.l.b16 %v2356
    %v2393 = vunpack.c.l.b16 %v2357
    %v2394 = vunpack.c.l.b16 %v2358
    %v2395 = vunpack.c.l.b16 %v2359
    %v2396 = vunpack.c.l.b16 %v2360
    %v2397 = vunpack.c.l.b16 %v2361
    %v2398 = vunpack.c.l.b16 %v2362
    %v2399 = vunpack.c.l.b16 %v2363
    %v2400 = vpack.c.b16 %v2385, %v2384
    %v2401 = vpack.c.b16 %v2387, %v2386
    %v2402 = vpack.c.b16 %v2389, %v2388
    %v2403 = vpack.c.b16 %v2391, %v2390
    %v2404 = vpack.c.b16 %v2393, %v2392
    %v2405 = vpack.c.b16 %v2395, %v2394
    %v2406 = vpack.c.b16 %v2397, %v2396
    %v2407 = vpack.c.b16 %v2399, %v2398
    %2416 = vmatpush.bf16.msra.mxu0 %v2407
    %2417 = vmatpush.bf16.msra.mxu0 %v2406
    %2418 = vmatpush.bf16.msra.mxu0 %v2405
    %2419 = vmatpush.bf16.msra.mxu0 %v2404
    %2420 = vmatpush.bf16.msra.mxu0 %v2403
    %2421 = vmatpush.bf16.msra.mxu0 %v2402
    %2422 = vmatpush.bf16.msra.mxu0 %v2401
    %2423 = vmatpush.bf16.msra.mxu0 %v2400
    %2424 = vmatmul.bf16.gmra.mxu0 %v2332
    %v2425 = vpop.f32.mrf.mxu0
    %v2426 = vadd.f32 %v2366, %v2425
    %v2427 = vpop.f32.mrf.mxu0
    %v2428 = vadd.f32 %v2366, %v2427
    %2429 = vmatmul.bf16.gmra.mxu0 %v2333
    %v2430 = vpop.f32.mrf.mxu0
    %v2431 = vadd.f32 %v2366, %v2430
    %v2432 = vpop.f32.mrf.mxu0
    %v2433 = vadd.f32 %v2366, %v2432
    %2434 = vmatmul.bf16.gmra.mxu0 %v2334
    %v2435 = vpop.f32.mrf.mxu0
    %v2436 = vadd.f32 %v2366, %v2435
    %v2437 = vpop.f32.mrf.mxu0
    %v2438 = vadd.f32 %v2366, %v2437
    %2439 = vmatmul.bf16.gmra.mxu0 %v2335
    %v2440 = vpop.f32.mrf.mxu0
    %v2441 = vadd.f32 %v2366, %v2440
    %v2442 = vpop.f32.mrf.mxu0
    %v2443 = vadd.f32 %v2366, %v2442
    %2444 = vmatmul.bf16.gmra.mxu0 %v2336
    %v2445 = vpop.f32.mrf.mxu0
    %v2446 = vadd.f32 %v2366, %v2445
    %v2447 = vpop.f32.mrf.mxu0
    %v2448 = vadd.f32 %v2366, %v2447
    %2449 = vmatmul.bf16.gmra.mxu0 %v2337
    %v2450 = vpop.f32.mrf.mxu0
    %v2451 = vadd.f32 %v2366, %v2450
    %v2452 = vpop.f32.mrf.mxu0
    %v2453 = vadd.f32 %v2366, %v2452
    %2454 = vmatmul.bf16.gmra.mxu0 %v2338
    %v2455 = vpop.f32.mrf.mxu0
    %v2456 = vadd.f32 %v2366, %v2455
    %v2457 = vpop.f32.mrf.mxu0
    %v2458 = vadd.f32 %v2366, %v2457
    %2459 = vmatmul.bf16.gmra.mxu0 %v2339
    %v2460 = vpop.f32.mrf.mxu0
    %v2461 = vadd.f32 %v2366, %v2460
    %v2462 = vpop.f32.mrf.mxu0
    %v2463 = vadd.f32 %v2366, %v2462
    %2464 = vmatmul.bf16.gmra.mxu0 %v2340
    %v2465 = vpop.f32.mrf.mxu0
    %v2466 = vadd.f32 %v2366, %v2465
    %v2467 = vpop.f32.mrf.mxu0
    %v2468 = vadd.f32 %v2366, %v2467
    %2469 = vmatmul.bf16.gmra.mxu0 %v2341
    %v2470 = vpop.f32.mrf.mxu0
    %v2471 = vadd.f32 %v2366, %v2470
    %v2472 = vpop.f32.mrf.mxu0
    %v2473 = vadd.f32 %v2366, %v2472
    %2474 = vmatmul.bf16.gmra.mxu0 %v2342
    %v2475 = vpop.f32.mrf.mxu0
    %v2476 = vadd.f32 %v2366, %v2475
    %v2477 = vpop.f32.mrf.mxu0
    %v2478 = vadd.f32 %v2366, %v2477
    %2479 = vmatmul.bf16.gmra.mxu0 %v2343
    %v2480 = vpop.f32.mrf.mxu0
    %v2481 = vadd.f32 %v2366, %v2480
    %v2482 = vpop.f32.mrf.mxu0
    %v2483 = vadd.f32 %v2366, %v2482
    %2484 = vmatmul.bf16.gmra.mxu0 %v2344
    %v2485 = vpop.f32.mrf.mxu0
    %v2486 = vadd.f32 %v2366, %v2485
    %v2487 = vpop.f32.mrf.mxu0
    %v2488 = vadd.f32 %v2366, %v2487
    %2489 = vmatmul.bf16.gmra.mxu0 %v2345
    %v2490 = vpop.f32.mrf.mxu0
    %v2491 = vadd.f32 %v2366, %v2490
    %v2492 = vpop.f32.mrf.mxu0
    %v2493 = vadd.f32 %v2366, %v2492
    %2494 = vmatmul.bf16.gmra.mxu0 %v2346
    %v2495 = vpop.f32.mrf.mxu0
    %v2496 = vadd.f32 %v2366, %v2495
    %v2497 = vpop.f32.mrf.mxu0
    %v2498 = vadd.f32 %v2366, %v2497
    %2499 = vmatmul.bf16.gmra.mxu0 %v2347
    %v2500 = vpop.f32.mrf.mxu0
    %v2501 = vadd.f32 %v2366, %v2500
    %v2502 = vpop.f32.mrf.mxu0
    %v2503 = vadd.f32 %v2366, %v2502
    %2504 = vdwg.mxu0
    %v2505 = vlaneseq
    %v2506 = vand.u32 %v2505, 127
    %vm2507 = vcmp.lt.s32.totalorder %v2506, 10
    %v2508 = vsel %vm2507, %v2426, -1e+30
    %v2509 = vsel %vm2507, %v2428, -1e+30
    %v2510 = vsel %vm2507, %v2431, -1e+30
    %v2511 = vsel %vm2507, %v2433, -1e+30
    %v2512 = vsel %vm2507, %v2436, -1e+30
    %v2513 = vsel %vm2507, %v2438, -1e+30
    %v2514 = vsel %vm2507, %v2441, -1e+30
    %v2515 = vsel %vm2507, %v2443, -1e+30
    %v2516 = vsel %vm2507, %v2446, -1e+30
    %v2517 = vsel %vm2507, %v2448, -1e+30
    %v2518 = vsel %vm2507, %v2451, -1e+30
    %v2519 = vsel %vm2507, %v2453, -1e+30
    %v2520 = vsel %vm2507, %v2456, -1e+30
    %v2521 = vsel %vm2507, %v2458, -1e+30
    %v2522 = vsel %vm2507, %v2461, -1e+30
    %v2523 = vsel %vm2507, %v2463, -1e+30
    %v2524 = vsel %vm2507, %v2466, -1e+30
    %v2525 = vsel %vm2507, %v2468, -1e+30
    %v2526 = vsel %vm2507, %v2471, -1e+30
    %v2527 = vsel %vm2507, %v2473, -1e+30
    %v2528 = vsel %vm2507, %v2476, -1e+30
    %v2529 = vsel %vm2507, %v2478, -1e+30
    %v2530 = vsel %vm2507, %v2481, -1e+30
    %v2531 = vsel %vm2507, %v2483, -1e+30
    %v2532 = vsel %vm2507, %v2486, -1e+30
    %v2533 = vsel %vm2507, %v2488, -1e+30
    %v2534 = vsel %vm2507, %v2491, -1e+30
    %v2535 = vsel %vm2507, %v2493, -1e+30
    %v2536 = vsel %vm2507, %v2496, -1e+30
    %v2537 = vsel %vm2507, %v2498, -1e+30
    %v2538 = vsel %vm2507, %v2501, -1e+30
    %v2539 = vsel %vm2507, %v2503, -1e+30
    %2540 = vmax.xlane.f32.xlu0 %v2508
    %v2541 = vpop.xlane.xlu0 %2540
    %2542 = vmax.xlane.f32.xlu0 %v2509
    %v2543 = vpop.xlane.xlu0 %2542
    %2544 = vmax.xlane.f32.xlu0 %v2510
    %v2545 = vpop.xlane.xlu0 %2544
    %2546 = vmax.xlane.f32.xlu0 %v2511
    %v2547 = vpop.xlane.xlu0 %2546
    %2548 = vmax.xlane.f32.xlu0 %v2512
    %v2549 = vpop.xlane.xlu0 %2548
    %2550 = vmax.xlane.f32.xlu0 %v2513
    %v2551 = vpop.xlane.xlu0 %2550
    %2552 = vmax.xlane.f32.xlu0 %v2514
    %v2553 = vpop.xlane.xlu0 %2552
    %2554 = vmax.xlane.f32.xlu0 %v2515
    %v2555 = vpop.xlane.xlu0 %2554
    %2556 = vmax.xlane.f32.xlu0 %v2516
    %v2557 = vpop.xlane.xlu0 %2556
    %2558 = vmax.xlane.f32.xlu0 %v2517
    %v2559 = vpop.xlane.xlu0 %2558
    %2560 = vmax.xlane.f32.xlu0 %v2518
    %v2561 = vpop.xlane.xlu0 %2560
    %2562 = vmax.xlane.f32.xlu0 %v2519
    %v2563 = vpop.xlane.xlu0 %2562
    %2564 = vmax.xlane.f32.xlu0 %v2520
    %v2565 = vpop.xlane.xlu0 %2564
    %2566 = vmax.xlane.f32.xlu0 %v2521
    %v2567 = vpop.xlane.xlu0 %2566
    %2568 = vmax.xlane.f32.xlu0 %v2522
    %v2569 = vpop.xlane.xlu0 %2568
    %2570 = vmax.xlane.f32.xlu0 %v2523
    %v2571 = vpop.xlane.xlu0 %2570
    %2572 = vmax.xlane.f32.xlu0 %v2524
    %v2573 = vpop.xlane.xlu0 %2572
    %2574 = vmax.xlane.f32.xlu0 %v2525
    %v2575 = vpop.xlane.xlu0 %2574
    %2576 = vmax.xlane.f32.xlu0 %v2526
    %v2577 = vpop.xlane.xlu0 %2576
    %2578 = vmax.xlane.f32.xlu0 %v2527
    %v2579 = vpop.xlane.xlu0 %2578
    %2580 = vmax.xlane.f32.xlu0 %v2528
    %v2581 = vpop.xlane.xlu0 %2580
    %2582 = vmax.xlane.f32.xlu0 %v2529
    %v2583 = vpop.xlane.xlu0 %2582
    %2584 = vmax.xlane.f32.xlu0 %v2530
    %v2585 = vpop.xlane.xlu0 %2584
    %2586 = vmax.xlane.f32.xlu0 %v2531
    %v2587 = vpop.xlane.xlu0 %2586
    %2588 = vmax.xlane.f32.xlu0 %v2532
    %v2589 = vpop.xlane.xlu0 %2588
    %2590 = vmax.xlane.f32.xlu0 %v2533
    %v2591 = vpop.xlane.xlu0 %2590
    %2592 = vmax.xlane.f32.xlu0 %v2534
    %v2593 = vpop.xlane.xlu0 %2592
    %2594 = vmax.xlane.f32.xlu0 %v2535
    %v2595 = vpop.xlane.xlu0 %2594
    %2596 = vmax.xlane.f32.xlu0 %v2536
    %v2597 = vpop.xlane.xlu0 %2596
    %2598 = vmax.xlane.f32.xlu0 %v2537
    %v2599 = vpop.xlane.xlu0 %2598
    %2600 = vmax.xlane.f32.xlu0 %v2538
    %v2601 = vpop.xlane.xlu0 %2600
    %2602 = vmax.xlane.f32.xlu0 %v2539
    %v2603 = vpop.xlane.xlu0 %2602
    %v2604 = vsub.f32 %v2426, %v2541
    %v2605 = vsub.f32 %v2428, %v2543
    %v2606 = vsub.f32 %v2431, %v2545
    %v2607 = vsub.f32 %v2433, %v2547
    %v2608 = vsub.f32 %v2436, %v2549
    %v2609 = vsub.f32 %v2438, %v2551
    %v2610 = vsub.f32 %v2441, %v2553
    %v2611 = vsub.f32 %v2443, %v2555
    %v2612 = vsub.f32 %v2446, %v2557
    %v2613 = vsub.f32 %v2448, %v2559
    %v2614 = vsub.f32 %v2451, %v2561
    %v2615 = vsub.f32 %v2453, %v2563
    %v2616 = vsub.f32 %v2456, %v2565
    %v2617 = vsub.f32 %v2458, %v2567
    %v2618 = vsub.f32 %v2461, %v2569
    %v2619 = vsub.f32 %v2463, %v2571
    %v2620 = vsub.f32 %v2466, %v2573
    %v2621 = vsub.f32 %v2468, %v2575
    %v2622 = vsub.f32 %v2471, %v2577
    %v2623 = vsub.f32 %v2473, %v2579
    %v2624 = vsub.f32 %v2476, %v2581
    %v2625 = vsub.f32 %v2478, %v2583
    %v2626 = vsub.f32 %v2481, %v2585
    %v2627 = vsub.f32 %v2483, %v2587
    %v2628 = vsub.f32 %v2486, %v2589
    %v2629 = vsub.f32 %v2488, %v2591
    %v2630 = vsub.f32 %v2491, %v2593
    %v2631 = vsub.f32 %v2493, %v2595
    %v2632 = vsub.f32 %v2496, %v2597
    %v2633 = vsub.f32 %v2498, %v2599
    %v2634 = vsub.f32 %v2501, %v2601
    %v2635 = vsub.f32 %v2503, %v2603
    %v2636 = vmul.f32 %v2604, 1.442695
    %v2637 = vpow.pop %v2636
    %v2638 = vmul.f32 %v2605, 1.442695
    %v2639 = vpow.pop %v2638
    %v2640 = vmul.f32 %v2606, 1.442695
    %v2641 = vpow.pop %v2640
    %v2642 = vmul.f32 %v2607, 1.442695
    %v2643 = vpow.pop %v2642
    %v2644 = vmul.f32 %v2608, 1.442695
    %v2645 = vpow.pop %v2644
    %v2646 = vmul.f32 %v2609, 1.442695
    %v2647 = vpow.pop %v2646
    %v2648 = vmul.f32 %v2610, 1.442695
    %v2649 = vpow.pop %v2648
    %v2650 = vmul.f32 %v2611, 1.442695
    %v2651 = vpow.pop %v2650
    %v2652 = vmul.f32 %v2612, 1.442695
    %v2653 = vpow.pop %v2652
    %v2654 = vmul.f32 %v2613, 1.442695
    %v2655 = vpow.pop %v2654
    %v2656 = vmul.f32 %v2614, 1.442695
    %v2657 = vpow.pop %v2656
    %v2658 = vmul.f32 %v2615, 1.442695
    %v2659 = vpow.pop %v2658
    %v2660 = vmul.f32 %v2616, 1.442695
    %v2661 = vpow.pop %v2660
    %v2662 = vmul.f32 %v2617, 1.442695
    %v2663 = vpow.pop %v2662
    %v2664 = vmul.f32 %v2618, 1.442695
    %v2665 = vpow.pop %v2664
    %v2666 = vmul.f32 %v2619, 1.442695
    %v2667 = vpow.pop %v2666
    %v2668 = vmul.f32 %v2620, 1.442695
    %v2669 = vpow.pop %v2668
    %v2670 = vmul.f32 %v2621, 1.442695
    %v2671 = vpow.pop %v2670
    %v2672 = vmul.f32 %v2622, 1.442695
    %v2673 = vpow.pop %v2672
    %v2674 = vmul.f32 %v2623, 1.442695
    %v2675 = vpow.pop %v2674
    %v2676 = vmul.f32 %v2624, 1.442695
    %v2677 = vpow.pop %v2676
    %v2678 = vmul.f32 %v2625, 1.442695
    %v2679 = vpow.pop %v2678
    %v2680 = vmul.f32 %v2626, 1.442695
    %v2681 = vpow.pop %v2680
    %v2682 = vmul.f32 %v2627, 1.442695
    %v2683 = vpow.pop %v2682
    %v2684 = vmul.f32 %v2628, 1.442695
    %v2685 = vpow.pop %v2684
    %v2686 = vmul.f32 %v2629, 1.442695
    %v2687 = vpow.pop %v2686
    %v2688 = vmul.f32 %v2630, 1.442695
    %v2689 = vpow.pop %v2688
    %v2690 = vmul.f32 %v2631, 1.442695
    %v2691 = vpow.pop %v2690
    %v2692 = vmul.f32 %v2632, 1.442695
    %v2693 = vpow.pop %v2692
    %v2694 = vmul.f32 %v2633, 1.442695
    %v2695 = vpow.pop %v2694
    %v2696 = vmul.f32 %v2634, 1.442695
    %v2697 = vpow.pop %v2696
    %v2698 = vmul.f32 %v2635, 1.442695
    %v2699 = vpow.pop %v2698
    %v2700 = vsel %vm2507, %v2637, 0.0
    %v2701 = vsel %vm2507, %v2639, 0.0
    %v2702 = vsel %vm2507, %v2641, 0.0
    %v2703 = vsel %vm2507, %v2643, 0.0
    %v2704 = vsel %vm2507, %v2645, 0.0
    %v2705 = vsel %vm2507, %v2647, 0.0
    %v2706 = vsel %vm2507, %v2649, 0.0
    %v2707 = vsel %vm2507, %v2651, 0.0
    %v2708 = vsel %vm2507, %v2653, 0.0
    %v2709 = vsel %vm2507, %v2655, 0.0
    %v2710 = vsel %vm2507, %v2657, 0.0
    %v2711 = vsel %vm2507, %v2659, 0.0
    %v2712 = vsel %vm2507, %v2661, 0.0
    %v2713 = vsel %vm2507, %v2663, 0.0
    %v2714 = vsel %vm2507, %v2665, 0.0
    %v2715 = vsel %vm2507, %v2667, 0.0
    %v2716 = vsel %vm2507, %v2669, 0.0
    %v2717 = vsel %vm2507, %v2671, 0.0
    %v2718 = vsel %vm2507, %v2673, 0.0
    %v2719 = vsel %vm2507, %v2675, 0.0
    %v2720 = vsel %vm2507, %v2677, 0.0
    %v2721 = vsel %vm2507, %v2679, 0.0
    %v2722 = vsel %vm2507, %v2681, 0.0
    %v2723 = vsel %vm2507, %v2683, 0.0
    %v2724 = vsel %vm2507, %v2685, 0.0
    %v2725 = vsel %vm2507, %v2687, 0.0
    %v2726 = vsel %vm2507, %v2689, 0.0
    %v2727 = vsel %vm2507, %v2691, 0.0
    %v2728 = vsel %vm2507, %v2693, 0.0
    %v2729 = vsel %vm2507, %v2695, 0.0
    %v2730 = vsel %vm2507, %v2697, 0.0
    %v2731 = vsel %vm2507, %v2699, 0.0
    %2732 = vadd.xlane.f32.xlu0 %v2700
    %v2733 = vpop.xlane.xlu0 %2732
    %2734 = vadd.xlane.f32.xlu0 %v2701
    %v2735 = vpop.xlane.xlu0 %2734
    %2736 = vadd.xlane.f32.xlu0 %v2702
    %v2737 = vpop.xlane.xlu0 %2736
    %2738 = vadd.xlane.f32.xlu0 %v2703
    %v2739 = vpop.xlane.xlu0 %2738
    %2740 = vadd.xlane.f32.xlu0 %v2704
    %v2741 = vpop.xlane.xlu0 %2740
    %2742 = vadd.xlane.f32.xlu0 %v2705
    %v2743 = vpop.xlane.xlu0 %2742
    %2744 = vadd.xlane.f32.xlu0 %v2706
    %v2745 = vpop.xlane.xlu0 %2744
    %2746 = vadd.xlane.f32.xlu0 %v2707
    %v2747 = vpop.xlane.xlu0 %2746
    %2748 = vadd.xlane.f32.xlu0 %v2708
    %v2749 = vpop.xlane.xlu0 %2748
    %2750 = vadd.xlane.f32.xlu0 %v2709
    %v2751 = vpop.xlane.xlu0 %2750
    %2752 = vadd.xlane.f32.xlu0 %v2710
    %v2753 = vpop.xlane.xlu0 %2752
    %2754 = vadd.xlane.f32.xlu0 %v2711
    %v2755 = vpop.xlane.xlu0 %2754
    %2756 = vadd.xlane.f32.xlu0 %v2712
    %v2757 = vpop.xlane.xlu0 %2756
    %2758 = vadd.xlane.f32.xlu0 %v2713
    %v2759 = vpop.xlane.xlu0 %2758
    %2760 = vadd.xlane.f32.xlu0 %v2714
    %v2761 = vpop.xlane.xlu0 %2760
    %2762 = vadd.xlane.f32.xlu0 %v2715
    %v2763 = vpop.xlane.xlu0 %2762
    %2764 = vadd.xlane.f32.xlu0 %v2716
    %v2765 = vpop.xlane.xlu0 %2764
    %2766 = vadd.xlane.f32.xlu0 %v2717
    %v2767 = vpop.xlane.xlu0 %2766
    %2768 = vadd.xlane.f32.xlu0 %v2718
    %v2769 = vpop.xlane.xlu0 %2768
    %2770 = vadd.xlane.f32.xlu0 %v2719
    %v2771 = vpop.xlane.xlu0 %2770
    %2772 = vadd.xlane.f32.xlu0 %v2720
    %v2773 = vpop.xlane.xlu0 %2772
    %2774 = vadd.xlane.f32.xlu0 %v2721
    %v2775 = vpop.xlane.xlu0 %2774
    %2776 = vadd.xlane.f32.xlu0 %v2722
    %v2777 = vpop.xlane.xlu0 %2776
    %2778 = vadd.xlane.f32.xlu0 %v2723
    %v2779 = vpop.xlane.xlu0 %2778
    %2780 = vadd.xlane.f32.xlu0 %v2724
    %v2781 = vpop.xlane.xlu0 %2780
    %2782 = vadd.xlane.f32.xlu0 %v2725
    %v2783 = vpop.xlane.xlu0 %2782
    %2784 = vadd.xlane.f32.xlu0 %v2726
    %v2785 = vpop.xlane.xlu0 %2784
    %2786 = vadd.xlane.f32.xlu0 %v2727
    %v2787 = vpop.xlane.xlu0 %2786
    %2788 = vadd.xlane.f32.xlu0 %v2728
    %v2789 = vpop.xlane.xlu0 %2788
    %2790 = vadd.xlane.f32.xlu0 %v2729
    %v2791 = vpop.xlane.xlu0 %2790
    %2792 = vadd.xlane.f32.xlu0 %v2730
    %v2793 = vpop.xlane.xlu0 %2792
    %2794 = vadd.xlane.f32.xlu0 %v2731
    %v2795 = vpop.xlane.xlu0 %2794
    %v2796 = vlog2.pop %v2733
    %v2797 = vmul.f32 %v2796, 0.6931472
    %v2798 = vlog2.pop %v2735
    %v2799 = vmul.f32 %v2798, 0.6931472
    %v2800 = vlog2.pop %v2737
    %v2801 = vmul.f32 %v2800, 0.6931472
    %v2802 = vlog2.pop %v2739
    %v2803 = vmul.f32 %v2802, 0.6931472
    %v2804 = vlog2.pop %v2741
    %v2805 = vmul.f32 %v2804, 0.6931472
    %v2806 = vlog2.pop %v2743
    %v2807 = vmul.f32 %v2806, 0.6931472
    %v2808 = vlog2.pop %v2745
    %v2809 = vmul.f32 %v2808, 0.6931472
    %v2810 = vlog2.pop %v2747
    %v2811 = vmul.f32 %v2810, 0.6931472
    %v2812 = vlog2.pop %v2749
    %v2813 = vmul.f32 %v2812, 0.6931472
    %v2814 = vlog2.pop %v2751
    %v2815 = vmul.f32 %v2814, 0.6931472
    %v2816 = vlog2.pop %v2753
    %v2817 = vmul.f32 %v2816, 0.6931472
    %v2818 = vlog2.pop %v2755
    %v2819 = vmul.f32 %v2818, 0.6931472
    %v2820 = vlog2.pop %v2757
    %v2821 = vmul.f32 %v2820, 0.6931472
    %v2822 = vlog2.pop %v2759
    %v2823 = vmul.f32 %v2822, 0.6931472
    %v2824 = vlog2.pop %v2761
    %v2825 = vmul.f32 %v2824, 0.6931472
    %v2826 = vlog2.pop %v2763
    %v2827 = vmul.f32 %v2826, 0.6931472
    %v2828 = vlog2.pop %v2765
    %v2829 = vmul.f32 %v2828, 0.6931472
    %v2830 = vlog2.pop %v2767
    %v2831 = vmul.f32 %v2830, 0.6931472
    %v2832 = vlog2.pop %v2769
    %v2833 = vmul.f32 %v2832, 0.6931472
    %v2834 = vlog2.pop %v2771
    %v2835 = vmul.f32 %v2834, 0.6931472
    %v2836 = vlog2.pop %v2773
    %v2837 = vmul.f32 %v2836, 0.6931472
    %v2838 = vlog2.pop %v2775
    %v2839 = vmul.f32 %v2838, 0.6931472
    %v2840 = vlog2.pop %v2777
    %v2841 = vmul.f32 %v2840, 0.6931472
    %v2842 = vlog2.pop %v2779
    %v2843 = vmul.f32 %v2842, 0.6931472
    %v2844 = vlog2.pop %v2781
    %v2845 = vmul.f32 %v2844, 0.6931472
    %v2846 = vlog2.pop %v2783
    %v2847 = vmul.f32 %v2846, 0.6931472
    %v2848 = vlog2.pop %v2785
    %v2849 = vmul.f32 %v2848, 0.6931472
    %v2850 = vlog2.pop %v2787
    %v2851 = vmul.f32 %v2850, 0.6931472
    %v2852 = vlog2.pop %v2789
    %v2853 = vmul.f32 %v2852, 0.6931472
    %v2854 = vlog2.pop %v2791
    %v2855 = vmul.f32 %v2854, 0.6931472
    %v2856 = vlog2.pop %v2793
    %v2857 = vmul.f32 %v2856, 0.6931472
    %v2858 = vlog2.pop %v2795
    %v2859 = vmul.f32 %v2858, 0.6931472
    %v2860 = vsub.f32 %v2604, %v2797
    %v2861 = vsub.f32 %v2605, %v2799
    %v2862 = vsub.f32 %v2606, %v2801
    %v2863 = vsub.f32 %v2607, %v2803
    %v2864 = vsub.f32 %v2608, %v2805
    %v2865 = vsub.f32 %v2609, %v2807
    %v2866 = vsub.f32 %v2610, %v2809
    %v2867 = vsub.f32 %v2611, %v2811
    %v2868 = vsub.f32 %v2612, %v2813
    %v2869 = vsub.f32 %v2613, %v2815
    %v2870 = vsub.f32 %v2614, %v2817
    %v2871 = vsub.f32 %v2615, %v2819
    %v2872 = vsub.f32 %v2616, %v2821
    %v2873 = vsub.f32 %v2617, %v2823
    %v2874 = vsub.f32 %v2618, %v2825
    %v2875 = vsub.f32 %v2619, %v2827
    %v2876 = vsub.f32 %v2620, %v2829
    %v2877 = vsub.f32 %v2621, %v2831
    %v2878 = vsub.f32 %v2622, %v2833
    %v2879 = vsub.f32 %v2623, %v2835
    %v2880 = vsub.f32 %v2624, %v2837
    %v2881 = vsub.f32 %v2625, %v2839
    %v2882 = vsub.f32 %v2626, %v2841
    %v2883 = vsub.f32 %v2627, %v2843
    %v2884 = vsub.f32 %v2628, %v2845
    %v2885 = vsub.f32 %v2629, %v2847
    %v2886 = vsub.f32 %v2630, %v2849
    %v2887 = vsub.f32 %v2631, %v2851
    %v2888 = vsub.f32 %v2632, %v2853
    %v2889 = vsub.f32 %v2633, %v2855
    %v2890 = vsub.f32 %v2634, %v2857
    %v2891 = vsub.f32 %v2635, %v2859
    %2892 = vst [vmem:[#allocation11] sm:$0xff] %v2860
    %2893 = vst [vmem:[#allocation11 + $0x8] sm:$0xff] %v2861
    %2894 = vst [vmem:[#allocation11 + $0x10] sm:$0xff] %v2862
    %2895 = vst [vmem:[#allocation11 + $0x18] sm:$0xff] %v2863
    %2896 = vst [vmem:[#allocation11 + $0x20] sm:$0xff] %v2864
    %2897 = vst [vmem:[#allocation11 + $0x28] sm:$0xff] %v2865
    %2898 = vst [vmem:[#allocation11 + $0x30] sm:$0xff] %v2866
    %2899 = vst [vmem:[#allocation11 + $0x38] sm:$0xff] %v2867
    %2900 = vst [vmem:[#allocation11 + $0x40] sm:$0xff] %v2868
    %2901 = vst [vmem:[#allocation11 + $0x48] sm:$0xff] %v2869
    %2902 = vst [vmem:[#allocation11 + $0x50] sm:$0xff] %v2870
    %2903 = vst [vmem:[#allocation11 + $0x58] sm:$0xff] %v2871
    %2904 = vst [vmem:[#allocation11 + $0x60] sm:$0xff] %v2872
    %2905 = vst [vmem:[#allocation11 + $0x68] sm:$0xff] %v2873
    %2906 = vst [vmem:[#allocation11 + $0x70] sm:$0xff] %v2874
    %2907 = vst [vmem:[#allocation11 + $0x78] sm:$0xff] %v2875
    %2908 = vst [vmem:[#allocation11 + $0x80] sm:$0xff] %v2876
    %2909 = vst [vmem:[#allocation11 + $0x88] sm:$0xff] %v2877
    %2910 = vst [vmem:[#allocation11 + $0x90] sm:$0xff] %v2878
    %2911 = vst [vmem:[#allocation11 + $0x98] sm:$0xff] %v2879
    %2912 = vst [vmem:[#allocation11 + $0xa0] sm:$0xff] %v2880
    %2913 = vst [vmem:[#allocation11 + $0xa8] sm:$0xff] %v2881
    %2914 = vst [vmem:[#allocation11 + $0xb0] sm:$0xff] %v2882
    %2915 = vst [vmem:[#allocation11 + $0xb8] sm:$0xff] %v2883
    %2916 = vst [vmem:[#allocation11 + $0xc0] sm:$0xff] %v2884
    %2917 = vst [vmem:[#allocation11 + $0xc8] sm:$0xff] %v2885
    %2918 = vst [vmem:[#allocation11 + $0xd0] sm:$0xff] %v2886
    %2919 = vst [vmem:[#allocation11 + $0xd8] sm:$0xff] %v2887
    %2920 = vst [vmem:[#allocation11 + $0xe0] sm:$0xff] %v2888
    %2921 = vst [vmem:[#allocation11 + $0xe8] sm:$0xff] %v2889
    %2922 = vst [vmem:[#allocation11 + $0xf0] sm:$0xff] %v2890
    %2923 = vst [vmem:[#allocation11 + $0xf8] sm:$0xff] %v2891
    // Predicated region
    $region58: #{tpu_custom_call.1} parent=1 // pred_check
      _
    $region59: #{tpu_custom_call.1} parent=1 // pred_check_branch
      %2925 = sbr.rel (0) target = $region61
    $region60: #{tpu_custom_call.1} parent=1 // pred_region
      %2927 = vsyncadd [#allocation4], 0
      %s2928 = sshll.u32 [#allocation11], 4
      %s2929 = int_to_ptr.vmem [resolvable:$true] %s2928
      %s2930 = sshll.u32 %s9, 4
      %s2931 = int_to_ptr.hbm [resolvable:$true] %s2930
      %2936 = dma.vmem_to_hbm [thread:$0]  %s2929, 4096, %s2931, [#allocation4], 128, 128, 8
    $region61: #{tpu_custom_call.1} parent=1 // pred_fallthru
      _
    // Predicated region
    $region62: #{tpu_custom_call.1} parent=1 // pred_check
      _
    $region63: #{tpu_custom_call.1} parent=1 // pred_check_branch
      %2938 = sbr.rel (0) target = $region65
    $region64: #{tpu_custom_call.1} parent=1 // pred_region
      %2940 = dma.done [#allocation4], 4096
    $region65: #{tpu_custom_call.1} parent=1 // pred_fallthru
      _
    %2941 = vsyncpa [#allocation3], 1
    %2942 = vsyncpa [#allocation6], 1
    %2943 = vsyncpa [#allocation9], 1
    %2944 = vsyncpa [#allocation4], 1

</llo_original>
